<compile_context>
chip_gen: v5e
topology: v5e:2x2
jax: 0.10.0
libtpu: 0.0.40
codegen_flags: <defaults>
</compile_context>

<pallas_src>
import functools

import jax
import jax.numpy as jnp
from jax.experimental import pallas as pl
from jax.experimental.pallas import tpu as pltpu

EPS = 1e-3  # BatchNorm2d eps=0.001
VMEM_LIMIT = 48 * 1024 * 1024  # <= v7x 64 MiB physical; ample on v5e/v6e


def _round_up(x, m):
    return (x + m - 1) // m * m


def conv_stats_kernel(p_ref, w_ref, y_ref, s_ref, acc_ref, *, tk):
    # p_ref:   (TM, TK)    bf16 im2col patch tile
    # w_ref:   (Kp, OCp)   bf16 full weight matrix (VMEM-resident: constant
    #                      index_map -> DMA'd from HBM exactly once)
    # y_ref:   (TM, OCp)   bf16 conv output tile
    # s_ref:   (1, 2, OCp) f32  per-M-tile partial [sum, sum_of_squares]
    # acc_ref: (TM, OCp)   f32  accumulator scratch
    k = pl.program_id(1)

    @pl.when(k == 0)
    def _():
        acc_ref[...] = jnp.zeros_like(acc_ref)

    k0 = pl.multiple_of(k * tk, tk)
    acc_ref[...] += jnp.dot(p_ref[...], w_ref[pl.ds(k0, tk), :],
                            preferred_element_type=jnp.float32)

    @pl.when(k == pl.num_programs(1) - 1)
    def _():
        y = acc_ref[...]
        # Stats come from the exact f32 accumulator; y round-trips in bf16.
        y_ref[...] = y.astype(y_ref.dtype)
        s_ref[0, 0:1, :] = jnp.sum(y, axis=0, keepdims=True)
        s_ref[0, 1:2, :] = jnp.sum(y * y, axis=0, keepdims=True)


def bn_relu_kernel(y_ref, scale_ref, shift_ref, o_ref):
    # Pre-fused BN: one FMA + max per element.  o aliases y's HBM buffer.
    y = y_ref[...].astype(jnp.float32)
    o_ref[...] = jnp.maximum(y * scale_ref[...] + shift_ref[...],
                             0.0).astype(o_ref.dtype)


def _im2col_nchw(x_nchw, kh, kw, stride, padding):
    # NCHW -> NHWC (bf16 BEFORE stacking, so the KH*KW-replicated intermediate
    # is half-size), pad spatially, extract (kh, kw) patches (K = kh*kw*c).
    x = jnp.transpose(x_nchw, (0, 2, 3, 1)).astype(jnp.bfloat16)
    x = jnp.pad(x, ((0, 0), (padding, padding), (padding, padding), (0, 0)))
    n, hp, wp, c = x.shape
    oh = (hp - kh) // stride + 1
    ow = (wp - kw) // stride + 1
    pieces = []
    for i in range(kh):
        for j in range(kw):
            pieces.append(x[:, i:i + (oh - 1) * stride + 1:stride,
                             j:j + (ow - 1) * stride + 1:stride, :])
    patches = jnp.stack(pieces, axis=3)  # (N, OH, OW, KH*KW, C)
    return patches.reshape(n * oh * ow, kh * kw * c), (n, oh, ow)


def basic_conv2d(x_nchw, conv_w, gamma, beta, *, stride=1, padding=1,
                 tm=512, tk=None):
    """x_nchw: (N, IC, H, W); conv_w: (OC, IC, KH, KW); gamma/beta: (OC,)."""
    oc, ic, kh, kw = conv_w.shape
    patches, (n, oh, ow) = _im2col_nchw(x_nchw, kh, kw, stride, padding)
    M, K = patches.shape

    # MXU / lane-friendly padding and tile sizing.
    oc_p = _round_up(oc, 128)
    if tk is None:
        tk = 256 if K >= 256 else 128      # 256-wide K tiles for v6e/v7x MXU
    k_p = _round_up(K, tk)
    n_k = k_p // tk

    tm = max(8, min(tm, _round_up(M, 8)))
    m_p = _round_up(M, tm)
    if m_p // tm < 2 and M > 8:
        # Keep >= 2 M tiles so the "parallel" axis shards across both v7x TCs.
        tm = _round_up((M + 1) // 2, 8)
        m_p = _round_up(M, tm)
    n_m = m_p // tm

    # bf16 MXU operands (f32 accumulation inside the kernel).
    patches_p = jnp.zeros((m_p, k_p), jnp.bfloat16).at[:M, :K].set(patches)
    # (OC, IC, KH, KW) -> (KH, KW, IC, OC) -> (K, OC), matching patch K order.
    w2d = jnp.transpose(conv_w, (2, 3, 1, 0)).reshape(K, oc)
    w_p = jnp.zeros((k_p, oc_p), jnp.bfloat16).at[:K, :oc].set(
        w2d.astype(jnp.bfloat16))

    cost1 = pl.CostEstimate(
        flops=2 * m_p * k_p * oc_p,
        transcendentals=0,
        bytes_accessed=(m_p * k_p * 2 + k_p * oc_p * 2
                        + m_p * oc_p * 2 + n_m * 2 * oc_p * 4))

    # ---- Phase 1: tiled conv matmul + per-tile BN partial statistics ----
    y, stats = pl.pallas_call(
        functools.partial(conv_stats_kernel, tk=tk),
        out_shape=(jax.ShapeDtypeStruct((m_p, oc_p), jnp.bfloat16),
                   jax.ShapeDtypeStruct((n_m, 2, oc_p), jnp.float32)),
        grid=(n_m, n_k),
        in_specs=[
            pl.BlockSpec((tm, tk), lambda i, k: (i, k)),
            # Full weight block with a constant index_map -> loaded once.
            pl.BlockSpec((k_p, oc_p), lambda i, k: (0, 0)),
        ],
        out_specs=(
            pl.BlockSpec((tm, oc_p), lambda i, k: (i, 0)),
            pl.BlockSpec((1, 2, oc_p), lambda i, k: (i, 0, 0)),
        ),
        scratch_shapes=[pltpu.VMEM((tm, oc_p), jnp.float32)],
        compiler_params=pltpu.CompilerParams(
            dimension_semantics=("parallel", "arbitrary"),
            vmem_limit_bytes=VMEM_LIMIT),
        cost_estimate=cost1,
    )(patches_p, w_p)

    # ---- Tiny glue: exact global batch stats -> fused scale/shift ----
    sums = jnp.sum(stats, axis=0)                   # (2, OCp)
    inv_m = 1.0 / float(M)                          # real count (N*OH*OW)
    mean = sums[0] * inv_m
    var = sums[1] * inv_m - mean * mean             # biased batch variance
    inv_std = jax.lax.rsqrt(jnp.maximum(var, 0.0) + EPS)
    gamma_p = jnp.zeros((oc_p,), jnp.float32).at[:oc].set(
        gamma.astype(jnp.float32))
    beta_p = jnp.zeros((oc_p,), jnp.float32).at[:oc].set(
        beta.astype(jnp.float32))
    scale = (gamma_p * inv_std).reshape(1, oc_p)
    shift = (beta_p - mean * gamma_p * inv_std).reshape(1, oc_p)

    cost2 = pl.CostEstimate(
        flops=3 * m_p * oc_p,
        transcendentals=0,
        bytes_accessed=2 * m_p * oc_p * 2 + 2 * oc_p * 4)

    # ---- Phase 2: BN affine + ReLU, tiled, parallel, aliased onto y ----
    out2d = pl.pallas_call(
        bn_relu_kernel,
        out_shape=jax.ShapeDtypeStruct((m_p, oc_p), jnp.bfloat16),
        grid=(n_m,),
        in_specs=[
            pl.BlockSpec((tm, oc_p), lambda i: (i, 0)),
            pl.BlockSpec((1, oc_p), lambda i: (0, 0)),
            pl.BlockSpec((1, oc_p), lambda i: (0, 0)),
        ],
        out_specs=pl.BlockSpec((tm, oc_p), lambda i: (i, 0)),
        input_output_aliases={0: 0},   # overwrite y in place (same HBM buffer)
        compiler_params=pltpu.CompilerParams(
            dimension_semantics=("parallel",),
            vmem_limit_bytes=VMEM_LIMIT),
        cost_estimate=cost2,
    )(y, scale, shift)

    # Slice off padding, (M, OC) -> (N, OH, OW, OC) -> NCHW (f32).
    out = out2d[:M, :oc].astype(jnp.float32).reshape(n, oh, ow, oc)
    return jnp.transpose(out, (0, 3, 1, 2))


def _reference(x, conv_w, gamma, beta, *, stride=1, padding=1):
    y = jax.lax.conv_general_dilated(
        x, conv_w, window_strides=(stride, stride),
        padding=[(padding, padding), (padding, padding)],
        dimension_numbers=("NCHW", "OIHW", "NCHW"))
    mean = jnp.mean(y, axis=(0, 2, 3), keepdims=True)
    var = jnp.mean((y - mean) ** 2, axis=(0, 2, 3), keepdims=True)
    yn = (y - mean) * jax.lax.rsqrt(var + EPS)
    yn = yn * gamma.reshape(1, -1, 1, 1) + beta.reshape(1, -1, 1, 1)
    return jnp.maximum(yn, 0.0)


if __name__ == "__main__":
    # BasicConv2d(4, 8, kernel_size=3, padding=1), small deterministic input.
    N, IC, H, W = 2, 4, 16, 16
    OC, KH, KW = 8, 3, 3

    key = jax.random.PRNGKey(0)
    kx, kw_ = jax.random.split(key)
    x = jax.random.normal(kx, (N, IC, H, W), dtype=jnp.float32)
    conv_w = jax.random.normal(kw_, (OC, IC, KH, KW), dtype=jnp.float32) * 0.1
    gamma = jnp.ones((OC,), dtype=jnp.float32)   # BatchNorm2d default weight
    beta = jnp.zeros((OC,), dtype=jnp.float32)   # BatchNorm2d default bias

    # jit so the phase-2 in-place aliasing applies to a true intermediate.
    run = jax.jit(functools.partial(basic_conv2d, stride=1, padding=1))
    out = run(x, conv_w, gamma, beta)
    jax.block_until_ready(out)
    assert out.shape == (N, OC, H, W), out.shape

    ref = _reference(x, conv_w, gamma, beta, stride=1, padding=1)
    jax.block_until_ready(ref)
    # bf16 MXU operands + bf16 y round-trip -> generous tolerance on
    # normalized outputs (statistics themselves are f32-exact).
    assert jnp.allclose(out, ref, rtol=5e-2, atol=5e-2), (
        float(jnp.max(jnp.abs(out - ref))))

    print("KERNEL_OK")
</pallas_src>

<mosaic_0001>
module attributes {stable_mosaic.version = 11 : i64} {
  func.func @conv_stats_kernel(%arg0: i32, %arg1: i32, %arg2: memref<256x128xbf16, #tpu.memory_space<vmem>>, %arg3: memref<128x128xbf16, #tpu.memory_space<vmem>>, %arg4: memref<256x128xbf16, #tpu.memory_space<vmem>>, %arg5: memref<1x2x128xf32, #tpu.memory_space<vmem>>, %arg6: memref<256x128xf32, #tpu.memory_space<vmem>>) attributes {dimension_semantics = [#tpu.dimension_semantics<parallel>, #tpu.dimension_semantics<arbitrary>], iteration_bounds = array<i64: 2, 1>, scalar_prefetch = 0 : i64, scratch_operands = 1 : i64, tpu.core_type = #tpu.core_type<tc>, window_params = [{transform_indices = @transform_0, window_bounds = array<i64: 256, 128>}, {pipeline_mode = #tpu.pipeline_mode<synchronous>, transform_indices = @transform_1, window_bounds = array<i64: 128, 128>}, {transform_indices = @transform_2, window_bounds = array<i64: 256, 128>}, {transform_indices = @transform_3, window_bounds = array<i64: 1, 2, 128>}]} {
    %c0_i32 = arith.constant 0 : i32
    %0 = arith.cmpi eq, %arg1, %c0_i32 : i32
    %1 = arith.extui %0 : i1 to i32
    %c0_i32_0 = arith.constant 0 : i32
    %2 = arith.cmpi ne, %1, %c0_i32_0 : i32
    scf.if %2 {
      %cst_9 = arith.constant 0.000000e+00 : f32
      %15 = vector.broadcast %cst_9 : f32 to vector<256x128xf32>
      %c0_10 = arith.constant 0 : index
      %c0_11 = arith.constant 0 : index
      %16 = vector.load %arg6[%c0_10, %c0_11] : memref<256x128xf32, #tpu.memory_space<vmem>>, vector<256x128xf32>
      tpu.vector_store %arg6[%c0_10, %c0_11], %15 {strides = array<i32>} : memref<256x128xf32, #tpu.memory_space<vmem>>, vector<256x128xf32>,
    } else {
    }
    %c128_i32 = arith.constant 128 : i32
    %3 = arith.muli %arg1, %c128_i32 : i32
    %4 = tpu.assume_multiple %3, 128 : i32
    %c0 = arith.constant 0 : index
    %c0_1 = arith.constant 0 : index
    %5 = vector.load %arg6[%c0, %c0_1] : memref<256x128xf32, #tpu.memory_space<vmem>>, vector<256x128xf32>
    %c0_2 = arith.constant 0 : index
    %c0_3 = arith.constant 0 : index
    %6 = vector.load %arg2[%c0_2, %c0_3] : memref<256x128xbf16, #tpu.memory_space<vmem>>, vector<256x128xbf16>
    %7 = arith.index_cast %4 : i32 to index
    %c0_4 = arith.constant 0 : index
    %8 = vector.load %arg3[%7, %c0_4] : memref<128x128xbf16, #tpu.memory_space<vmem>>, vector<128x128xbf16>
    %cst = arith.constant dense<0.000000e+00> : vector<256x128xf32>
    %9 = tpu.matmul %6, %8, %cst {dimension_numbers = #tpu.dot_dimension_numbers<[1], [0], [0], [1], [0, 0, 1, 1], [], []>} : vector<256x128xbf16>, vector<128x128xbf16>, vector<256x128xf32> -> vector<256x128xf32>
    %10 = arith.addf %5, %9 : vector<256x128xf32>
    %c0_5 = arith.constant 0 : index
    %c0_6 = arith.constant 0 : index
    %11 = vector.load %arg6[%c0_5, %c0_6] : memref<256x128xf32, #tpu.memory_space<vmem>>, vector<256x128xf32>
    tpu.vector_store %arg6[%c0_5, %c0_6], %10 {strides = array<i32>} : memref<256x128xf32, #tpu.memory_space<vmem>>, vector<256x128xf32>,
    %c0_i32_7 = arith.constant 0 : i32
    %12 = arith.cmpi eq, %arg1, %c0_i32_7 : i32
    %13 = arith.extui %12 : i1 to i32
    %c0_i32_8 = arith.constant 0 : i32
    %14 = arith.cmpi ne, %13, %c0_i32_8 : i32
    scf.if %14 {
      %c0_9 = arith.constant 0 : index
      %c0_10 = arith.constant 0 : index
      %15 = vector.load %arg6[%c0_9, %c0_10] : memref<256x128xf32, #tpu.memory_space<vmem>>, vector<256x128xf32>
      %16 = arith.truncf %15 : vector<256x128xf32> to vector<256x128xbf16>
      %c0_11 = arith.constant 0 : index
      %c0_12 = arith.constant 0 : index
      %17 = vector.load %arg4[%c0_11, %c0_12] : memref<256x128xbf16, #tpu.memory_space<vmem>>, vector<256x128xbf16>
      tpu.vector_store %arg4[%c0_11, %c0_12], %16 {strides = array<i32>} : memref<256x128xbf16, #tpu.memory_space<vmem>>, vector<256x128xbf16>,
      %cst_13 = arith.constant dense<0.000000e+00> : vector<128xf32>
      %18 = vector.multi_reduction <add>, %15, %cst_13 [0] : vector<256x128xf32> to vector<128xf32>
      %19 = vector.shape_cast %18 : vector<128xf32> to vector<1x128xf32>
      %c0_14 = arith.constant 0 : index
      %c0_15 = arith.constant 0 : index
      %c0_16 = arith.constant 0 : index
      %20 = vector.load %arg5[%c0_14, %c0_15, %c0_16] : memref<1x2x128xf32, #tpu.memory_space<vmem>>, vector<1x1x128xf32>
      %21 = vector.shape_cast %20 : vector<1x1x128xf32> to vector<1x128xf32>
      %22 = vector.shape_cast %19 : vector<1x128xf32> to vector<1x1x128xf32>
      tpu.vector_store %arg5[%c0_14, %c0_15, %c0_16], %22 {strides = array<i32>} : memref<1x2x128xf32, #tpu.memory_space<vmem>>, vector<1x1x128xf32>,
      %23 = arith.mulf %15, %15 : vector<256x128xf32>
      %cst_17 = arith.constant dense<0.000000e+00> : vector<128xf32>
      %24 = vector.multi_reduction <add>, %23, %cst_17 [0] : vector<256x128xf32> to vector<128xf32>
      %25 = vector.shape_cast %24 : vector<128xf32> to vector<1x128xf32>
      %c0_18 = arith.constant 0 : index
      %c1 = arith.constant 1 : index
      %c0_19 = arith.constant 0 : index
      %26 = vector.load %arg5[%c0_18, %c1, %c0_19] : memref<1x2x128xf32, #tpu.memory_space<vmem>>, vector<1x1x128xf32>
      %27 = vector.shape_cast %26 : vector<1x1x128xf32> to vector<1x128xf32>
      %28 = vector.shape_cast %25 : vector<1x128xf32> to vector<1x1x128xf32>
      tpu.vector_store %arg5[%c0_18, %c1, %c0_19], %28 {strides = array<i32>} : memref<1x2x128xf32, #tpu.memory_space<vmem>>, vector<1x1x128xf32>,
    } else {
    }
    return
  }
  func.func @transform_0(%arg0: i32, %arg1: i32) -> (i32, i32) {
    %c0_i32 = arith.constant 0 : i32
    return %arg0, %arg1 : i32, i32
  }
  func.func @transform_1(%arg0: i32, %arg1: i32) -> (i32, i32) {
    %c0_i32 = arith.constant 0 : i32
    %c0_i32_0 = arith.constant 0 : i32
    %c0_i32_1 = arith.constant 0 : i32
    return %c0_i32, %c0_i32_0 : i32, i32
  }
  func.func @transform_2(%arg0: i32, %arg1: i32) -> (i32, i32) {
    %c0_i32 = arith.constant 0 : i32
    %c0_i32_0 = arith.constant 0 : i32
    return %arg0, %c0_i32 : i32, i32
  }
  func.func @transform_3(%arg0: i32, %arg1: i32) -> (i32, i32, i32) {
    %c0_i32 = arith.constant 0 : i32
    %c0_i32_0 = arith.constant 0 : i32
    %c0_i32_1 = arith.constant 0 : i32
    return %arg0, %c0_i32, %c0_i32_0 : i32, i32, i32
  }
}

module attributes {stable_mosaic.version = 11 : i64} {
  func.func @bn_relu_kernel(%arg0: i32, %arg1: memref<256x128xbf16, #tpu.memory_space<vmem>>, %arg2: memref<1x128xf32, #tpu.memory_space<vmem>>, %arg3: memref<1x128xf32, #tpu.memory_space<vmem>>, %arg4: memref<256x128xbf16, #tpu.memory_space<vmem>>) attributes {dimension_semantics = [#tpu.dimension_semantics<parallel>], iteration_bounds = array<i64: 2>, scalar_prefetch = 0 : i64, scratch_operands = 0 : i64, tpu.core_type = #tpu.core_type<tc>, window_params = [{transform_indices = @transform_0, window_bounds = array<i64: 256, 128>}, {pipeline_mode = #tpu.pipeline_mode<synchronous>, transform_indices = @transform_1, window_bounds = array<i64: 1, 128>}, {pipeline_mode = #tpu.pipeline_mode<synchronous>, transform_indices = @transform_2, window_bounds = array<i64: 1, 128>}, {transform_indices = @transform_3, window_bounds = array<i64: 256, 128>}]} {
    %c0 = arith.constant 0 : index
    %c0_0 = arith.constant 0 : index
    %0 = vector.load %arg1[%c0, %c0_0] : memref<256x128xbf16, #tpu.memory_space<vmem>>, vector<256x128xbf16>
    %1 = arith.extf %0 : vector<256x128xbf16> to vector<256x128xf32>
    %c0_1 = arith.constant 0 : index
    %c0_2 = arith.constant 0 : index
    %2 = vector.load %arg2[%c0_1, %c0_2] : memref<1x128xf32, #tpu.memory_space<vmem>>, vector<1x128xf32>
    %3 = vector.broadcast %2 : vector<1x128xf32> to vector<256x128xf32>
    %4 = arith.mulf %1, %3 : vector<256x128xf32>
    %c0_3 = arith.constant 0 : index
    %c0_4 = arith.constant 0 : index
    %5 = vector.load %arg3[%c0_3, %c0_4] : memref<1x128xf32, #tpu.memory_space<vmem>>, vector<1x128xf32>
    %6 = vector.broadcast %5 : vector<1x128xf32> to vector<256x128xf32>
    %7 = arith.addf %4, %6 : vector<256x128xf32>
    %cst = arith.constant 0.000000e+00 : f32
    %8 = vector.broadcast %cst : f32 to vector<256x128xf32>
    %9 = arith.maximumf %7, %8 : vector<256x128xf32>
    %10 = arith.truncf %9 : vector<256x128xf32> to vector<256x128xbf16>
    %c0_5 = arith.constant 0 : index
    %c0_6 = arith.constant 0 : index
    %11 = vector.load %arg4[%c0_5, %c0_6] : memref<256x128xbf16, #tpu.memory_space<vmem>>, vector<256x128xbf16>
    tpu.vector_store %arg4[%c0_5, %c0_6], %10 {strides = array<i32>} : memref<256x128xbf16, #tpu.memory_space<vmem>>, vector<256x128xbf16>,
    return
  }
  func.func @transform_0(%arg0: i32) -> (i32, i32) {
    %c0_i32 = arith.constant 0 : i32
    %c0_i32_0 = arith.constant 0 : i32
    return %arg0, %c0_i32 : i32, i32
  }
  func.func @transform_1(%arg0: i32) -> (i32, i32) {
    %c0_i32 = arith.constant 0 : i32
    %c0_i32_0 = arith.constant 0 : i32
    %c0_i32_1 = arith.constant 0 : i32
    return %c0_i32, %c0_i32_0 : i32, i32
  }
  func.func @transform_2(%arg0: i32) -> (i32, i32) {
    %c0_i32 = arith.constant 0 : i32
    %c0_i32_0 = arith.constant 0 : i32
    %c0_i32_1 = arith.constant 0 : i32
    return %c0_i32, %c0_i32_0 : i32, i32
  }
  func.func @transform_3(%arg0: i32) -> (i32, i32) {
    %c0_i32 = arith.constant 0 : i32
    %c0_i32_0 = arith.constant 0 : i32
    return %arg0, %c0_i32 : i32, i32
  }
}

</mosaic_0001>

<llo_original>
// kernel: basic_conv2d.3
$region0: #{basic_conv2d.3}
  #allocation0 [shape = 'u32[]', space=smem, size = 0x4, offset = 0x4, fixed_abs, tag = 'smem constant byte address 0x4 - core index']
  #allocation1 [shape = 'u32[72,128]{1,0:T(1,128)}', space=vmem, size = 0x9000, scoped, tag = 'internal scratch']
  %s0 = inlined_call_operand.vmem [shape: bf16[512,128], index: 0, kind: input, shape index: {}, may-alias: {0,3}]
  %s1 = inlined_call_operand.vmem [shape: f32[1,128], index: 1, kind: input, shape index: {}]
  %s2 = inlined_call_operand.vmem [shape: f32[1,128], index: 2, kind: input, shape index: {}]
  %s3 = inlined_call_operand.vmem [shape: bf16[512,128], index: 3, kind: output, shape index: {}, may-alias: {0,3}]
  %s4 = sld [smem:[#allocation0]]
  $region45: #{basic_conv2d.3} parent=0
    _
  %s6 = ssub.s32 1, %s4
  %s7 = scalar_select 0, %s6, %s4
  loop: start=0, step=1, limit=4
  $region2: #{basic_conv2d.3} parent=0 // loop_pre_header
    _
  $region3: #{basic_conv2d.3} parent=0 // loop_header
    %s9 = sphi 0, %s13
    %p10 = scmp.ge.s32.totalorder %s9, 4
    %s19 = sphi 0, %s21
    %s22 = sphi 0, %s19
    %s23 = sphi 0, %s22
    %s39 = sphi 0, %s23
    %s43 = sphi 0, %s43
    %s45 = sphi 0, %s43
    %s46 = sphi 0, %s45
    %s60 = sphi 0, %s46
    %s64 = sphi 0, %s64
    %s66 = sphi 0, %s64
    %s67 = sphi 0, %s66
    %s81 = sphi 0, %s67
    %s87 = sphi 0, %s89
    %s90 = sphi 0, %s87
    %s91 = sphi 0, %s90
    %s107 = sphi 0, %s91
  $region4: #{basic_conv2d.3} parent=0 // loop_header_branch
    %12 = sbr.rel (%p10) target = $region8
  $region5: #{basic_conv2d.3} parent=0 // loop_body
    %s14 = ssub.s32 %s9, 1
    %s15 = ssub.s32 %s9, 2
    %s16 = sadd.s32 %s9, 1
    %s17 = ssub.s32 %s9, %s16
    %p18 = scmp.eq.s32.totalorder %s17, 0
    %s20 = sadd.s32 %s19, 1
    %s21 = scalar_select %p18, %s19, %s20
    %p24 = pneg %p18
    %p25 = scmp.eq.s32.totalorder %s9, 1
    %p26 = por %p24, %p25
    %p27 = scmp.ne.s32.totalorder %s19, %s22
    %p28 = scmp.eq.s32.totalorder %s9, 0
    %p29 = por %p27, %p28
    %p30 = scmp.ne.s32.totalorder %s19, %s22
    %p31 = scmp.eq.s32.totalorder %s14, 1
    %p32 = por %p30, %p31
    %p33 = scmp.ne.s32.totalorder %s22, %s23
    %p34 = scmp.eq.s32.totalorder %s14, 0
    %p35 = por %p33, %p34
    %p36 = scmp.ne.s32.totalorder %s22, %s23
    %p37 = scmp.eq.s32.totalorder %s15, 1
    %p38 = por %p36, %p37
    %p40 = scmp.ne.s32.totalorder %s23, %s39
    %p41 = scmp.eq.s32.totalorder %s15, 0
    %p42 = por %p40, %p41
    %s44 = sadd.s32 %s43, 1
    %p47 = scmp.eq.s32.totalorder %s9, 1
    %p48 = scmp.ne.s32.totalorder %s43, %s45
    %p49 = scmp.eq.s32.totalorder %s9, 0
    %p50 = por %p48, %p49
    %p51 = scmp.ne.s32.totalorder %s43, %s45
    %p52 = scmp.eq.s32.totalorder %s14, 1
    %p53 = por %p51, %p52
    %p54 = scmp.ne.s32.totalorder %s45, %s46
    %p55 = scmp.eq.s32.totalorder %s14, 0
    %p56 = por %p54, %p55
    %p57 = scmp.ne.s32.totalorder %s45, %s46
    %p58 = scmp.eq.s32.totalorder %s15, 1
    %p59 = por %p57, %p58
    %p61 = scmp.ne.s32.totalorder %s46, %s60
    %p62 = scmp.eq.s32.totalorder %s15, 0
    %p63 = por %p61, %p62
    %s65 = sadd.s32 %s64, 1
    %p68 = scmp.eq.s32.totalorder %s9, 1
    %p69 = scmp.ne.s32.totalorder %s64, %s66
    %p70 = scmp.eq.s32.totalorder %s9, 0
    %p71 = por %p69, %p70
    %p72 = scmp.ne.s32.totalorder %s64, %s66
    %p73 = scmp.eq.s32.totalorder %s14, 1
    %p74 = por %p72, %p73
    %p75 = scmp.ne.s32.totalorder %s66, %s67
    %p76 = scmp.eq.s32.totalorder %s14, 0
    %p77 = por %p75, %p76
    %p78 = scmp.ne.s32.totalorder %s66, %s67
    %p79 = scmp.eq.s32.totalorder %s15, 1
    %p80 = por %p78, %p79
    %p82 = scmp.ne.s32.totalorder %s67, %s81
    %p83 = scmp.eq.s32.totalorder %s15, 0
    %p84 = por %p82, %p83
    %s85 = ssub.s32 %s9, %s16
    %p86 = scmp.eq.s32.totalorder %s85, 0
    %s88 = sadd.s32 %s87, 1
    %s89 = scalar_select %p86, %s87, %s88
    %p92 = pneg %p86
    %p93 = scmp.eq.s32.totalorder %s9, 1
    %p94 = por %p92, %p93
    %p95 = scmp.ne.s32.totalorder %s87, %s90
    %p96 = scmp.eq.s32.totalorder %s9, 0
    %p97 = por %p95, %p96
    %p98 = scmp.ne.s32.totalorder %s87, %s90
    %p99 = scmp.eq.s32.totalorder %s14, 1
    %p100 = por %p98, %p99
    %p101 = scmp.ne.s32.totalorder %s90, %s91
    %p102 = scmp.eq.s32.totalorder %s14, 0
    %p103 = por %p101, %p102
    %p104 = scmp.ne.s32.totalorder %s90, %s91
    %p105 = scmp.eq.s32.totalorder %s15, 1
    %p106 = por %p104, %p105
    %p108 = scmp.ne.s32.totalorder %s91, %s107
    %p109 = scmp.eq.s32.totalorder %s15, 0
    %p110 = por %p108, %p109
    %p111 = scmp.le.s32.totalorder 1, %s9
    %p112 = scmp.lt.s32.totalorder %s9, 3
    %p113 = pnand %p111, %p112
    %p114 = pneg %p113
    // Predicated region
    $region9: #{basic_conv2d.3} parent=5 // pred_check
      _
    $region10: #{basic_conv2d.3} parent=5 // pred_check_branch
      %116 = sbr.rel (%p113) target = $region12
    $region11: #{basic_conv2d.3} parent=5 // pred_region
      %s117 = ssub.s32 %s9, 1
      // Predicated region
      $region13: #{basic_conv2d.3} parent=11 // pred_check
        %p118 = pneg %p56
      $region14: #{basic_conv2d.3} parent=11 // pred_check_branch
        %120 = sbr.rel (%p118) target = $region16
      $region15: #{basic_conv2d.3} parent=11 // pred_region
        _
      $region16: #{basic_conv2d.3} parent=11 // pred_fallthru
        _
      // Predicated region
      $region17: #{basic_conv2d.3} parent=11 // pred_check
        %p121 = pneg %p77
      $region18: #{basic_conv2d.3} parent=11 // pred_check_branch
        %123 = sbr.rel (%p121) target = $region20
      $region19: #{basic_conv2d.3} parent=11 // pred_region
        _
      $region20: #{basic_conv2d.3} parent=11 // pred_fallthru
        _
    $region12: #{basic_conv2d.3} parent=5 // pred_fallthru
      _
    %p124 = scmp.lt.s32.totalorder %s9, 2
    // Predicated region
    $region21: #{basic_conv2d.3} parent=5 // pred_check
      %p125 = pneg %p124
    $region22: #{basic_conv2d.3} parent=5 // pred_check_branch
      %127 = sbr.rel (%p125) target = $region24
    $region23: #{basic_conv2d.3} parent=5 // pred_region
      // Predicated region
      $region25: #{basic_conv2d.3} parent=23 // pred_check
        %p128 = pneg %p29
      $region26: #{basic_conv2d.3} parent=23 // pred_check_branch
        %130 = sbr.rel (%p128) target = $region28
      $region27: #{basic_conv2d.3} parent=23 // pred_region
        %s131 = smul.u32 32, %s9
        %p132 = scmp.lt.s32.totalorder %s131, 63
        %s133 = scalar_select %p132, %s131, 63
        %s134 = smul.addr %s133, 4
        %s135 = scalar_lea.vmem %s0, %s134
        %s136 = smul.u32 32, %s9
      $region28: #{basic_conv2d.3} parent=23 // pred_fallthru
        _
    $region24: #{basic_conv2d.3} parent=5 // pred_fallthru
      _
    %p137 = scmp.le.s32.totalorder 1, %s9
    %p138 = scmp.lt.s32.totalorder %s9, 3
    %p139 = pnand %p137, %p138
    %p140 = pneg %p139
    // Predicated region
    $region29: #{basic_conv2d.3} parent=5 // pred_check
      _
    $region30: #{basic_conv2d.3} parent=5 // pred_check_branch
      %142 = sbr.rel (%p139) target = $region32
    $region31: #{basic_conv2d.3} parent=5 // pred_region
      %s143 = ssub.s32 %s9, 1
      %s144 = smul.u32 32, %s14
      %p145 = scmp.lt.s32.totalorder %s144, 63
      %s146 = scalar_select %p145, %s144, 63
      %s147 = smul.addr %s146, 4
      %s148 = scalar_lea.vmem %s0, %s147
      %p149 = pneg %p35
      %p150 = pneg %p32
      %p151 = pneg %p56
      %p152 = pneg %p53
      %p153 = pneg %p77
      %p154 = pneg %p74
      %p155 = pneg %p103
      %p156 = pneg %p100
      %s157 = smul.u32 32, %s14
      %p158 = scmp.lt.s32.totalorder %s157, 63
      %s159 = scalar_select %p158, %s157, 63
      %s160 = smul.addr %s159, 4
      %s161 = scalar_lea.vmem %s3, %s160
      %s162 = smul.u32 32, %s14
      %p163 = scmp.lt.s32.totalorder %s162, 63
      %s164 = scalar_select %p163, %s162, 63
      %s165 = smul.addr %s164, 4
      %s166 = scalar_lea.vmem %s0, %s165
      %s167 = smul.u32 32, %s14
      %s168 = smul.u32 32, %s14
      %p169 = scmp.lt.s32.totalorder %s168, 63
      %s170 = scalar_select %p169, %s168, 63
      %s171 = smul.addr %s170, 4
      %s172 = scalar_lea.vmem %s3, %s171
      %s173 = smul.u32 32, %s14
      %v174 = vld [vmem:[%s166] sm:$0xf]
      %v175 = vld [vmem:[%s166 + $0x4] sm:$0xf]
      %v176 = vld [vmem:[%s166 + $0x8] sm:$0xf]
      %v177 = vld [vmem:[%s166 + $0xc] sm:$0xf]
      %v178 = vld [vmem:[%s166 + $0x10] sm:$0xf]
      %v179 = vld [vmem:[%s166 + $0x14] sm:$0xf]
      %v180 = vld [vmem:[%s166 + $0x18] sm:$0xf]
      %v181 = vld [vmem:[%s166 + $0x1c] sm:$0xf]
      %v182 = vld [vmem:[%s166 + $0x20] sm:$0xf]
      %v183 = vld [vmem:[%s166 + $0x24] sm:$0xf]
      %v184 = vld [vmem:[%s166 + $0x28] sm:$0xf]
      %v185 = vld [vmem:[%s166 + $0x2c] sm:$0xf]
      %v186 = vld [vmem:[%s166 + $0x30] sm:$0xf]
      %v187 = vld [vmem:[%s166 + $0x34] sm:$0xf]
      %v188 = vld [vmem:[%s166 + $0x38] sm:$0xf]
      %v189 = vld [vmem:[%s166 + $0x3c] sm:$0xf]
      %v190 = vld [vmem:[%s166 + $0x40] sm:$0xf]
      %v191 = vld [vmem:[%s166 + $0x44] sm:$0xf]
      %v192 = vld [vmem:[%s166 + $0x48] sm:$0xf]
      %v193 = vld [vmem:[%s166 + $0x4c] sm:$0xf]
      %v194 = vld [vmem:[%s166 + $0x50] sm:$0xf]
      %v195 = vld [vmem:[%s166 + $0x54] sm:$0xf]
      %v196 = vld [vmem:[%s166 + $0x58] sm:$0xf]
      %v197 = vld [vmem:[%s166 + $0x5c] sm:$0xf]
      %v198 = vld [vmem:[%s166 + $0x60] sm:$0xf]
      %v199 = vld [vmem:[%s166 + $0x64] sm:$0xf]
      %v200 = vld [vmem:[%s166 + $0x68] sm:$0xf]
      %v201 = vld [vmem:[%s166 + $0x6c] sm:$0xf]
      %v202 = vld [vmem:[%s166 + $0x70] sm:$0xf]
      %v203 = vld [vmem:[%s166 + $0x74] sm:$0xf]
      %v204 = vld [vmem:[%s166 + $0x78] sm:$0xf]
      %v205 = vld [vmem:[%s166 + $0x7c] sm:$0xf]
      %v206 = vunpack.c.l.bf16 %v174
      %v207 = vunpack.c.l.bf16 %v175
      %v208 = vunpack.c.l.bf16 %v176
      %v209 = vunpack.c.l.bf16 %v177
      %v210 = vunpack.c.l.bf16 %v178
      %v211 = vunpack.c.l.bf16 %v179
      %v212 = vunpack.c.l.bf16 %v180
      %v213 = vunpack.c.l.bf16 %v181
      %v214 = vunpack.c.l.bf16 %v182
      %v215 = vunpack.c.l.bf16 %v183
      %v216 = vunpack.c.l.bf16 %v184
      %v217 = vunpack.c.l.bf16 %v185
      %v218 = vunpack.c.l.bf16 %v186
      %v219 = vunpack.c.l.bf16 %v187
      %v220 = vunpack.c.l.bf16 %v188
      %v221 = vunpack.c.l.bf16 %v189
      %v222 = vunpack.c.l.bf16 %v190
      %v223 = vunpack.c.l.bf16 %v191
      %v224 = vunpack.c.l.bf16 %v192
      %v225 = vunpack.c.l.bf16 %v193
      %v226 = vunpack.c.l.bf16 %v194
      %v227 = vunpack.c.l.bf16 %v195
      %v228 = vunpack.c.l.bf16 %v196
      %v229 = vunpack.c.l.bf16 %v197
      %v230 = vunpack.c.l.bf16 %v198
      %v231 = vunpack.c.l.bf16 %v199
      %v232 = vunpack.c.l.bf16 %v200
      %v233 = vunpack.c.l.bf16 %v201
      %v234 = vunpack.c.l.bf16 %v202
      %v235 = vunpack.c.l.bf16 %v203
      %v236 = vunpack.c.l.bf16 %v204
      %v237 = vunpack.c.l.bf16 %v205
      %v238 = vld [vmem:[%s1] sm:$0x1]
      %v240 = vperm.slane %v238, 0
      %v242 = vmul.f32 %v206, %v240
      %v243 = vmul.f32 %v207, %v240
      %v244 = vmul.f32 %v208, %v240
      %v245 = vmul.f32 %v209, %v240
      %v246 = vmul.f32 %v210, %v240
      %v247 = vmul.f32 %v211, %v240
      %v248 = vmul.f32 %v212, %v240
      %v249 = vmul.f32 %v213, %v240
      %v250 = vmul.f32 %v214, %v240
      %v251 = vmul.f32 %v215, %v240
      %v252 = vmul.f32 %v216, %v240
      %v253 = vmul.f32 %v217, %v240
      %v254 = vmul.f32 %v218, %v240
      %v255 = vmul.f32 %v219, %v240
      %v256 = vmul.f32 %v220, %v240
      %v257 = vmul.f32 %v221, %v240
      %v258 = vmul.f32 %v222, %v240
      %v259 = vmul.f32 %v223, %v240
      %v260 = vmul.f32 %v224, %v240
      %v261 = vmul.f32 %v225, %v240
      %v262 = vmul.f32 %v226, %v240
      %v263 = vmul.f32 %v227, %v240
      %v264 = vmul.f32 %v228, %v240
      %v265 = vmul.f32 %v229, %v240
      %v266 = vmul.f32 %v230, %v240
      %v267 = vmul.f32 %v231, %v240
      %v268 = vmul.f32 %v232, %v240
      %v269 = vmul.f32 %v233, %v240
      %v270 = vmul.f32 %v234, %v240
      %v271 = vmul.f32 %v235, %v240
      %v272 = vmul.f32 %v236, %v240
      %v273 = vmul.f32 %v237, %v240
      %v274 = vld [vmem:[%s2] sm:$0x1]
      %v276 = vperm.slane %v274, 0
      %v278 = vadd.f32 %v242, %v276
      %v279 = vadd.f32 %v243, %v276
      %v280 = vadd.f32 %v244, %v276
      %v281 = vadd.f32 %v245, %v276
      %v282 = vadd.f32 %v246, %v276
      %v283 = vadd.f32 %v247, %v276
      %v284 = vadd.f32 %v248, %v276
      %v285 = vadd.f32 %v249, %v276
      %v286 = vadd.f32 %v250, %v276
      %v287 = vadd.f32 %v251, %v276
      %v288 = vadd.f32 %v252, %v276
      %v289 = vadd.f32 %v253, %v276
      %v290 = vadd.f32 %v254, %v276
      %v291 = vadd.f32 %v255, %v276
      %v292 = vadd.f32 %v256, %v276
      %v293 = vadd.f32 %v257, %v276
      %v294 = vadd.f32 %v258, %v276
      %v295 = vadd.f32 %v259, %v276
      %v296 = vadd.f32 %v260, %v276
      %v297 = vadd.f32 %v261, %v276
      %v298 = vadd.f32 %v262, %v276
      %v299 = vadd.f32 %v263, %v276
      %v300 = vadd.f32 %v264, %v276
      %v301 = vadd.f32 %v265, %v276
      %v302 = vadd.f32 %v266, %v276
      %v303 = vadd.f32 %v267, %v276
      %v304 = vadd.f32 %v268, %v276
      %v305 = vadd.f32 %v269, %v276
      %v306 = vadd.f32 %v270, %v276
      %v307 = vadd.f32 %v271, %v276
      %v308 = vadd.f32 %v272, %v276
      %v309 = vadd.f32 %v273, %v276
      %v310 = vmax.f32 %v278, 0.0
      %v311 = vmax.f32 %v279, 0.0
      %v312 = vmax.f32 %v280, 0.0
      %v313 = vmax.f32 %v281, 0.0
      %v314 = vmax.f32 %v282, 0.0
      %v315 = vmax.f32 %v283, 0.0
      %v316 = vmax.f32 %v284, 0.0
      %v317 = vmax.f32 %v285, 0.0
      %v318 = vmax.f32 %v286, 0.0
      %v319 = vmax.f32 %v287, 0.0
      %v320 = vmax.f32 %v288, 0.0
      %v321 = vmax.f32 %v289, 0.0
      %v322 = vmax.f32 %v290, 0.0
      %v323 = vmax.f32 %v291, 0.0
      %v324 = vmax.f32 %v292, 0.0
      %v325 = vmax.f32 %v293, 0.0
      %v326 = vmax.f32 %v294, 0.0
      %v327 = vmax.f32 %v295, 0.0
      %v328 = vmax.f32 %v296, 0.0
      %v329 = vmax.f32 %v297, 0.0
      %v330 = vmax.f32 %v298, 0.0
      %v331 = vmax.f32 %v299, 0.0
      %v332 = vmax.f32 %v300, 0.0
      %v333 = vmax.f32 %v301, 0.0
      %v334 = vmax.f32 %v302, 0.0
      %v335 = vmax.f32 %v303, 0.0
      %v336 = vmax.f32 %v304, 0.0
      %v337 = vmax.f32 %v305, 0.0
      %v338 = vmax.f32 %v306, 0.0
      %v339 = vmax.f32 %v307, 0.0
      %v340 = vmax.f32 %v308, 0.0
      %v341 = vmax.f32 %v309, 0.0
      %v342 = vpack.c.bf16 %v310, %v310
      %v343 = vpack.c.bf16 %v311, %v311
      %v344 = vpack.c.bf16 %v312, %v312
      %v345 = vpack.c.bf16 %v313, %v313
      %v346 = vpack.c.bf16 %v314, %v314
      %v347 = vpack.c.bf16 %v315, %v315
      %v348 = vpack.c.bf16 %v316, %v316
      %v349 = vpack.c.bf16 %v317, %v317
      %v350 = vpack.c.bf16 %v318, %v318
      %v351 = vpack.c.bf16 %v319, %v319
      %v352 = vpack.c.bf16 %v320, %v320
      %v353 = vpack.c.bf16 %v321, %v321
      %v354 = vpack.c.bf16 %v322, %v322
      %v355 = vpack.c.bf16 %v323, %v323
      %v356 = vpack.c.bf16 %v324, %v324
      %v357 = vpack.c.bf16 %v325, %v325
      %v358 = vpack.c.bf16 %v326, %v326
      %v359 = vpack.c.bf16 %v327, %v327
      %v360 = vpack.c.bf16 %v328, %v328
      %v361 = vpack.c.bf16 %v329, %v329
      %v362 = vpack.c.bf16 %v330, %v330
      %v363 = vpack.c.bf16 %v331, %v331
      %v364 = vpack.c.bf16 %v332, %v332
      %v365 = vpack.c.bf16 %v333, %v333
      %v366 = vpack.c.bf16 %v334, %v334
      %v367 = vpack.c.bf16 %v335, %v335
      %v368 = vpack.c.bf16 %v336, %v336
      %v369 = vpack.c.bf16 %v337, %v337
      %v370 = vpack.c.bf16 %v338, %v338
      %v371 = vpack.c.bf16 %v339, %v339
      %v372 = vpack.c.bf16 %v340, %v340
      %v373 = vpack.c.bf16 %v341, %v341
      %374 = vst [vmem:[%s172] sm:$0xf] %v342
      %375 = vst [vmem:[%s172 + $0x4] sm:$0xf] %v343
      %376 = vst [vmem:[%s172 + $0x8] sm:$0xf] %v344
      %377 = vst [vmem:[%s172 + $0xc] sm:$0xf] %v345
      %378 = vst [vmem:[%s172 + $0x10] sm:$0xf] %v346
      %379 = vst [vmem:[%s172 + $0x14] sm:$0xf] %v347
      %380 = vst [vmem:[%s172 + $0x18] sm:$0xf] %v348
      %381 = vst [vmem:[%s172 + $0x1c] sm:$0xf] %v349
      %382 = vst [vmem:[%s172 + $0x20] sm:$0xf] %v350
      %383 = vst [vmem:[%s172 + $0x24] sm:$0xf] %v351
      %384 = vst [vmem:[%s172 + $0x28] sm:$0xf] %v352
      %385 = vst [vmem:[%s172 + $0x2c] sm:$0xf] %v353
      %386 = vst [vmem:[%s172 + $0x30] sm:$0xf] %v354
      %387 = vst [vmem:[%s172 + $0x34] sm:$0xf] %v355
      %388 = vst [vmem:[%s172 + $0x38] sm:$0xf] %v356
      %389 = vst [vmem:[%s172 + $0x3c] sm:$0xf] %v357
      %390 = vst [vmem:[%s172 + $0x40] sm:$0xf] %v358
      %391 = vst [vmem:[%s172 + $0x44] sm:$0xf] %v359
      %392 = vst [vmem:[%s172 + $0x48] sm:$0xf] %v360
      %393 = vst [vmem:[%s172 + $0x4c] sm:$0xf] %v361
      %394 = vst [vmem:[%s172 + $0x50] sm:$0xf] %v362
      %395 = vst [vmem:[%s172 + $0x54] sm:$0xf] %v363
      %396 = vst [vmem:[%s172 + $0x58] sm:$0xf] %v364
      %397 = vst [vmem:[%s172 + $0x5c] sm:$0xf] %v365
      %398 = vst [vmem:[%s172 + $0x60] sm:$0xf] %v366
      %399 = vst [vmem:[%s172 + $0x64] sm:$0xf] %v367
      %400 = vst [vmem:[%s172 + $0x68] sm:$0xf] %v368
      %401 = vst [vmem:[%s172 + $0x6c] sm:$0xf] %v369
      %402 = vst [vmem:[%s172 + $0x70] sm:$0xf] %v370
      %403 = vst [vmem:[%s172 + $0x74] sm:$0xf] %v371
      %404 = vst [vmem:[%s172 + $0x78] sm:$0xf] %v372
      %405 = vst [vmem:[%s172 + $0x7c] sm:$0xf] %v373
      %s406 = smul.u32 32, %s14
      %p407 = scmp.lt.s32.totalorder %s406, 63
      %s408 = scalar_select %p407, %s406, 63
      %s409 = smul.addr %s408, 4
      %s410 = scalar_lea.vmem %s3, %s409
      // Predicated region
      $region33: #{basic_conv2d.3} parent=31 // pred_check
        %p411 = pneg %p100
      $region34: #{basic_conv2d.3} parent=31 // pred_check_branch
        %413 = sbr.rel (%p411) target = $region36
      $region35: #{basic_conv2d.3} parent=31 // pred_region
        %s414 = smul.u32 32, %s14
      $region36: #{basic_conv2d.3} parent=31 // pred_fallthru
        _
    $region32: #{basic_conv2d.3} parent=5 // pred_fallthru
      _
    %p415 = scmp.le.s32.totalorder 2, %s9
    // Predicated region
    $region37: #{basic_conv2d.3} parent=5 // pred_check
      %p416 = pneg %p415
    $region38: #{basic_conv2d.3} parent=5 // pred_check_branch
      %418 = sbr.rel (%p416) target = $region40
    $region39: #{basic_conv2d.3} parent=5 // pred_region
      %s419 = ssub.s32 %s9, 2
      // Predicated region
      $region41: #{basic_conv2d.3} parent=39 // pred_check
        %p420 = pneg %p106
      $region42: #{basic_conv2d.3} parent=39 // pred_check_branch
        %422 = sbr.rel (%p420) target = $region44
      $region43: #{basic_conv2d.3} parent=39 // pred_region
        %s423 = smul.u32 32, %s15
        %p424 = scmp.lt.s32.totalorder %s423, 63
        %s425 = scalar_select %p424, %s423, 63
        %s426 = smul.addr %s425, 4
        %s427 = scalar_lea.vmem %s3, %s426
      $region44: #{basic_conv2d.3} parent=39 // pred_fallthru
        _
    $region40: #{basic_conv2d.3} parent=5 // pred_fallthru
      _
  $region6: #{basic_conv2d.3} parent=0 // loop_footer
    %s13 = sadd.s32 1, %s9
  $region7: #{basic_conv2d.3} parent=0 // loop_footer_branch
    %8 = sbr.rel target = $region3
  $region8: #{basic_conv2d.3} parent=0 // loop_exit
    _

// kernel: basic_conv2d.2
$region0: #{basic_conv2d.2}
  #allocation0 [shape = 'u32[]', space=smem, size = 0x4, offset = 0x4, fixed_abs, tag = 'smem constant byte address 0x4 - core index']
  #allocation1 [shape = 'u32[72,128]{1,0:T(1,128)}', space=vmem, size = 0x9000, scoped, tag = 'internal scratch']
  #allocation2 [shape = 'f32[256,128]{1,0:T(8,128)}', space=vmem, size = 0x20000, scoped, tag = 'scratch operand']
  %s0 = inlined_call_operand.vmem [shape: bf16[512,128], index: 0, kind: input, shape index: {}]
  %s1 = inlined_call_operand.vmem [shape: bf16[128,128], index: 1, kind: input, shape index: {}]
  %s2 = inlined_call_operand.vmem [shape: bf16[512,128], index: 2, kind: output, shape index: {0}]
  %s3 = inlined_call_operand.vmem [shape: f32[2,2,128], index: 3, kind: output, shape index: {1}]
  %4 = xla_tuple %s2, %s3
  %s5 = sld [smem:[#allocation0]]
  $region57: #{basic_conv2d.2} parent=0
    _
  %s7 = ssub.s32 1, %s5
  %s8 = scalar_select 0, %s7, %s5
  loop: start=0, step=1, limit=4
  $region2: #{basic_conv2d.2} parent=0 // loop_pre_header
    _
  $region3: #{basic_conv2d.2} parent=0 // loop_header
    %s10 = sphi 0, %s14
    %p11 = scmp.ge.s32.totalorder %s10, 4
    %s17 = sphi 0, %s29
    %s18 = sphi 0, %s25
    %s19 = sphi 0, %s17
    %s20 = sphi 0, %s18
    %s21 = sphi 0, %s19
    %s22 = sphi 0, %s20
    %s34 = sphi 0, %s36
    %s37 = sphi 0, %s34
    %s38 = sphi 0, %s37
    %s54 = sphi 0, %s38
    %s58 = sphi 0, %s58
    %s60 = sphi 0, %s58
    %s61 = sphi 0, %s60
    %s75 = sphi 0, %s61
    %s81 = sphi 0, %s83
    %s84 = sphi 0, %s81
    %s85 = sphi 0, %s84
    %s101 = sphi 0, %s85
    %s107 = sphi 0, %s109
    %s110 = sphi 0, %s107
    %s111 = sphi 0, %s110
    %s127 = sphi 0, %s111
  $region4: #{basic_conv2d.2} parent=0 // loop_header_branch
    %13 = sbr.rel (%p11) target = $region8
  $region5: #{basic_conv2d.2} parent=0 // loop_body
    %s15 = ssub.s32 %s10, 1
    %s16 = ssub.s32 %s10, 2
    %s23 = sadd.s32 1, %s18
    %p24 = scmp.ge.s32.totalorder %s23, 1
    %s25 = scalar_select %p24, 0, %s23
    %s26 = sadd.s32 1, %s17
    %s27 = scalar_select %p24, %s26, %s17
    %p28 = scmp.ge.s32.totalorder %s27, 2
    %s29 = scalar_select %p28, 0, %s27
    %s30 = ssub.s32 %s17, %s29
    %s31 = ssub.s32 %s18, %s25
    %s32 = sor.u32 %s30, %s31
    %p33 = scmp.eq.s32.totalorder %s32, 0
    %s35 = sadd.s32 %s34, 1
    %s36 = scalar_select %p33, %s34, %s35
    %p39 = pneg %p33
    %p40 = scmp.eq.s32.totalorder %s10, 1
    %p41 = por %p39, %p40
    %p42 = scmp.ne.s32.totalorder %s34, %s37
    %p43 = scmp.eq.s32.totalorder %s10, 0
    %p44 = por %p42, %p43
    %p45 = scmp.ne.s32.totalorder %s34, %s37
    %p46 = scmp.eq.s32.totalorder %s15, 1
    %p47 = por %p45, %p46
    %p48 = scmp.ne.s32.totalorder %s37, %s38
    %p49 = scmp.eq.s32.totalorder %s15, 0
    %p50 = por %p48, %p49
    %p51 = scmp.ne.s32.totalorder %s37, %s38
    %p52 = scmp.eq.s32.totalorder %s16, 1
    %p53 = por %p51, %p52
    %p55 = scmp.ne.s32.totalorder %s38, %s54
    %p56 = scmp.eq.s32.totalorder %s16, 0
    %p57 = por %p55, %p56
    %s59 = sadd.s32 %s58, 1
    %p62 = scmp.eq.s32.totalorder %s10, 1
    %p63 = scmp.ne.s32.totalorder %s58, %s60
    %p64 = scmp.eq.s32.totalorder %s10, 0
    %p65 = por %p63, %p64
    %p66 = scmp.ne.s32.totalorder %s58, %s60
    %p67 = scmp.eq.s32.totalorder %s15, 1
    %p68 = por %p66, %p67
    %p69 = scmp.ne.s32.totalorder %s60, %s61
    %p70 = scmp.eq.s32.totalorder %s15, 0
    %p71 = por %p69, %p70
    %p72 = scmp.ne.s32.totalorder %s60, %s61
    %p73 = scmp.eq.s32.totalorder %s16, 1
    %p74 = por %p72, %p73
    %p76 = scmp.ne.s32.totalorder %s61, %s75
    %p77 = scmp.eq.s32.totalorder %s16, 0
    %p78 = por %p76, %p77
    %s79 = ssub.s32 %s17, %s29
    %p80 = scmp.eq.s32.totalorder %s79, 0
    %s82 = sadd.s32 %s81, 1
    %s83 = scalar_select %p80, %s81, %s82
    %p86 = pneg %p80
    %p87 = scmp.eq.s32.totalorder %s10, 1
    %p88 = por %p86, %p87
    %p89 = scmp.ne.s32.totalorder %s81, %s84
    %p90 = scmp.eq.s32.totalorder %s10, 0
    %p91 = por %p89, %p90
    %p92 = scmp.ne.s32.totalorder %s81, %s84
    %p93 = scmp.eq.s32.totalorder %s15, 1
    %p94 = por %p92, %p93
    %p95 = scmp.ne.s32.totalorder %s84, %s85
    %p96 = scmp.eq.s32.totalorder %s15, 0
    %p97 = por %p95, %p96
    %p98 = scmp.ne.s32.totalorder %s84, %s85
    %p99 = scmp.eq.s32.totalorder %s16, 1
    %p100 = por %p98, %p99
    %p102 = scmp.ne.s32.totalorder %s85, %s101
    %p103 = scmp.eq.s32.totalorder %s16, 0
    %p104 = por %p102, %p103
    %s105 = ssub.s32 %s17, %s29
    %p106 = scmp.eq.s32.totalorder %s105, 0
    %s108 = sadd.s32 %s107, 1
    %s109 = scalar_select %p106, %s107, %s108
    %p112 = pneg %p106
    %p113 = scmp.eq.s32.totalorder %s10, 1
    %p114 = por %p112, %p113
    %p115 = scmp.ne.s32.totalorder %s107, %s110
    %p116 = scmp.eq.s32.totalorder %s10, 0
    %p117 = por %p115, %p116
    %p118 = scmp.ne.s32.totalorder %s107, %s110
    %p119 = scmp.eq.s32.totalorder %s15, 1
    %p120 = por %p118, %p119
    %p121 = scmp.ne.s32.totalorder %s110, %s111
    %p122 = scmp.eq.s32.totalorder %s15, 0
    %p123 = por %p121, %p122
    %p124 = scmp.ne.s32.totalorder %s110, %s111
    %p125 = scmp.eq.s32.totalorder %s16, 1
    %p126 = por %p124, %p125
    %p128 = scmp.ne.s32.totalorder %s111, %s127
    %p129 = scmp.eq.s32.totalorder %s16, 0
    %p130 = por %p128, %p129
    %p131 = scmp.le.s32.totalorder 1, %s10
    %p132 = scmp.lt.s32.totalorder %s10, 3
    %p133 = pnand %p131, %p132
    %p134 = pneg %p133
    // Predicated region
    $region9: #{basic_conv2d.2} parent=5 // pred_check
      _
    $region10: #{basic_conv2d.2} parent=5 // pred_check_branch
      %136 = sbr.rel (%p133) target = $region12
    $region11: #{basic_conv2d.2} parent=5 // pred_region
      %s137 = ssub.s32 %s10, 1
      // Predicated region
      $region13: #{basic_conv2d.2} parent=11 // pred_check
        %p138 = pneg %p71
      $region14: #{basic_conv2d.2} parent=11 // pred_check_branch
        %140 = sbr.rel (%p138) target = $region16
      $region15: #{basic_conv2d.2} parent=11 // pred_region
        _
      $region16: #{basic_conv2d.2} parent=11 // pred_fallthru
        _
    $region12: #{basic_conv2d.2} parent=5 // pred_fallthru
      _
    %p141 = scmp.lt.s32.totalorder %s10, 2
    // Predicated region
    $region17: #{basic_conv2d.2} parent=5 // pred_check
      %p142 = pneg %p141
    $region18: #{basic_conv2d.2} parent=5 // pred_check_branch
      %144 = sbr.rel (%p142) target = $region20
    $region19: #{basic_conv2d.2} parent=5 // pred_region
      // Predicated region
      $region21: #{basic_conv2d.2} parent=19 // pred_check
        %p145 = pneg %p44
      $region22: #{basic_conv2d.2} parent=19 // pred_check_branch
        %147 = sbr.rel (%p145) target = $region24
      $region23: #{basic_conv2d.2} parent=19 // pred_region
        %s148 = smul.u32 32, %s17
        %p149 = scmp.lt.s32.totalorder %s148, 63
        %s150 = scalar_select %p149, %s148, 63
        %p151 = scmp.lt.s32.totalorder %s18, 0
        %s152 = scalar_select %p151, %s18, 0
        %s153 = sadd.s32 %s152, %s150
        %s154 = smul.addr %s153, 4
        %s155 = scalar_lea.vmem %s0, %s154
        %s156 = smul.u32 32, %s17
      $region24: #{basic_conv2d.2} parent=19 // pred_fallthru
        _
    $region20: #{basic_conv2d.2} parent=5 // pred_fallthru
      _
    %p157 = scmp.le.s32.totalorder 1, %s10
    %p158 = scmp.lt.s32.totalorder %s10, 3
    %p159 = pnand %p157, %p158
    %p160 = pneg %p159
    // Predicated region
    $region25: #{basic_conv2d.2} parent=5 // pred_check
      _
    $region26: #{basic_conv2d.2} parent=5 // pred_check_branch
      %162 = sbr.rel (%p159) target = $region28
    $region27: #{basic_conv2d.2} parent=5 // pred_region
      %s163 = ssub.s32 %s10, 1
      %s164 = smul.u32 32, %s19
      %p165 = scmp.lt.s32.totalorder %s164, 63
      %s166 = scalar_select %p165, %s164, 63
      %p167 = scmp.lt.s32.totalorder %s20, 0
      %s168 = scalar_select %p167, %s20, 0
      %s169 = sadd.s32 %s168, %s166
      %s170 = smul.addr %s169, 4
      %s171 = scalar_lea.vmem %s0, %s170
      %p172 = pneg %p50
      %p173 = pneg %p47
      %p174 = pneg %p71
      %p175 = pneg %p68
      %p176 = pneg %p97
      %p177 = pneg %p94
      %s178 = smul.u32 32, %s19
      %p179 = scmp.lt.s32.totalorder %s178, 63
      %s180 = scalar_select %p179, %s178, 63
      %s181 = smul.addr %s180, 4
      %s182 = scalar_lea.vmem %s2, %s181
      %p183 = pneg %p123
      %p184 = pneg %p120
      %p185 = scmp.lt.s32.totalorder %s19, 1
      %s186 = scalar_select %p185, %s19, 1
      %s187 = smul.addr %s186, 2
      %s188 = scalar_lea.vmem %s3, %s187
      %s189 = smul.u32 32, %s19
      %p190 = scmp.lt.s32.totalorder %s189, 63
      %s191 = scalar_select %p190, %s189, 63
      %p192 = scmp.lt.s32.totalorder %s20, 0
      %s193 = scalar_select %p192, %s20, 0
      %s194 = sadd.s32 %s193, %s191
      %s195 = smul.addr %s194, 4
      %s196 = scalar_lea.vmem %s0, %s195
      %s197 = smul.u32 32, %s19
      %s198 = smul.u32 32, %s19
      %p199 = scmp.lt.s32.totalorder %s198, 63
      %s200 = scalar_select %p199, %s198, 63
      %s201 = smul.addr %s200, 4
      %s202 = scalar_lea.vmem %s2, %s201
      %s203 = smul.u32 32, %s19
      %p204 = scmp.lt.s32.totalorder %s19, 1
      %s205 = scalar_select %p204, %s19, 1
      %s206 = smul.addr %s205, 2
      %s207 = scalar_lea.vmem %s3, %s206
      %p208 = scmp.eq.s32.totalorder %s20, 0
      // Predicated region
      $region29: #{basic_conv2d.2} parent=27 // pred_check
        %p209 = pneg %p208
      $region30: #{basic_conv2d.2} parent=27 // pred_check_branch
        %211 = sbr.rel (%p209) target = $region32
      $region31: #{basic_conv2d.2} parent=27 // pred_region
        %212 = vst [vmem:[#allocation2] sm:$0xff] 0.0
        %213 = vst [vmem:[#allocation2 + $0x8] sm:$0xff] 0.0
        %214 = vst [vmem:[#allocation2 + $0x10] sm:$0xff] 0.0
        %215 = vst [vmem:[#allocation2 + $0x18] sm:$0xff] 0.0
        %216 = vst [vmem:[#allocation2 + $0x20] sm:$0xff] 0.0
        %217 = vst [vmem:[#allocation2 + $0x28] sm:$0xff] 0.0
        %218 = vst [vmem:[#allocation2 + $0x30] sm:$0xff] 0.0
        %219 = vst [vmem:[#allocation2 + $0x38] sm:$0xff] 0.0
        %220 = vst [vmem:[#allocation2 + $0x40] sm:$0xff] 0.0
        %221 = vst [vmem:[#allocation2 + $0x48] sm:$0xff] 0.0
        %222 = vst [vmem:[#allocation2 + $0x50] sm:$0xff] 0.0
        %223 = vst [vmem:[#allocation2 + $0x58] sm:$0xff] 0.0
        %224 = vst [vmem:[#allocation2 + $0x60] sm:$0xff] 0.0
        %225 = vst [vmem:[#allocation2 + $0x68] sm:$0xff] 0.0
        %226 = vst [vmem:[#allocation2 + $0x70] sm:$0xff] 0.0
        %227 = vst [vmem:[#allocation2 + $0x78] sm:$0xff] 0.0
        %228 = vst [vmem:[#allocation2 + $0x80] sm:$0xff] 0.0
        %229 = vst [vmem:[#allocation2 + $0x88] sm:$0xff] 0.0
        %230 = vst [vmem:[#allocation2 + $0x90] sm:$0xff] 0.0
        %231 = vst [vmem:[#allocation2 + $0x98] sm:$0xff] 0.0
        %232 = vst [vmem:[#allocation2 + $0xa0] sm:$0xff] 0.0
        %233 = vst [vmem:[#allocation2 + $0xa8] sm:$0xff] 0.0
        %234 = vst [vmem:[#allocation2 + $0xb0] sm:$0xff] 0.0
        %235 = vst [vmem:[#allocation2 + $0xb8] sm:$0xff] 0.0
        %236 = vst [vmem:[#allocation2 + $0xc0] sm:$0xff] 0.0
        %237 = vst [vmem:[#allocation2 + $0xc8] sm:$0xff] 0.0
        %238 = vst [vmem:[#allocation2 + $0xd0] sm:$0xff] 0.0
        %239 = vst [vmem:[#allocation2 + $0xd8] sm:$0xff] 0.0
        %240 = vst [vmem:[#allocation2 + $0xe0] sm:$0xff] 0.0
        %241 = vst [vmem:[#allocation2 + $0xe8] sm:$0xff] 0.0
        %242 = vst [vmem:[#allocation2 + $0xf0] sm:$0xff] 0.0
        %243 = vst [vmem:[#allocation2 + $0xf8] sm:$0xff] 0.0
      $region32: #{basic_conv2d.2} parent=27 // pred_fallthru
        _
      %s244 = smul.u32 %s20, 128
      %v245 = vld [vmem:[#allocation2] sm:$0xff]
      %v246 = vld [vmem:[#allocation2 + $0x8] sm:$0xff]
      %v247 = vld [vmem:[#allocation2 + $0x10] sm:$0xff]
      %v248 = vld [vmem:[#allocation2 + $0x18] sm:$0xff]
      %v249 = vld [vmem:[#allocation2 + $0x20] sm:$0xff]
      %v250 = vld [vmem:[#allocation2 + $0x28] sm:$0xff]
      %v251 = vld [vmem:[#allocation2 + $0x30] sm:$0xff]
      %v252 = vld [vmem:[#allocation2 + $0x38] sm:$0xff]
      %v253 = vld [vmem:[#allocation2 + $0x40] sm:$0xff]
      %v254 = vld [vmem:[#allocation2 + $0x48] sm:$0xff]
      %v255 = vld [vmem:[#allocation2 + $0x50] sm:$0xff]
      %v256 = vld [vmem:[#allocation2 + $0x58] sm:$0xff]
      %v257 = vld [vmem:[#allocation2 + $0x60] sm:$0xff]
      %v258 = vld [vmem:[#allocation2 + $0x68] sm:$0xff]
      %v259 = vld [vmem:[#allocation2 + $0x70] sm:$0xff]
      %v260 = vld [vmem:[#allocation2 + $0x78] sm:$0xff]
      %v261 = vld [vmem:[#allocation2 + $0x80] sm:$0xff]
      %v262 = vld [vmem:[#allocation2 + $0x88] sm:$0xff]
      %v263 = vld [vmem:[#allocation2 + $0x90] sm:$0xff]
      %v264 = vld [vmem:[#allocation2 + $0x98] sm:$0xff]
      %v265 = vld [vmem:[#allocation2 + $0xa0] sm:$0xff]
      %v266 = vld [vmem:[#allocation2 + $0xa8] sm:$0xff]
      %v267 = vld [vmem:[#allocation2 + $0xb0] sm:$0xff]
      %v268 = vld [vmem:[#allocation2 + $0xb8] sm:$0xff]
      %v269 = vld [vmem:[#allocation2 + $0xc0] sm:$0xff]
      %v270 = vld [vmem:[#allocation2 + $0xc8] sm:$0xff]
      %v271 = vld [vmem:[#allocation2 + $0xd0] sm:$0xff]
      %v272 = vld [vmem:[#allocation2 + $0xd8] sm:$0xff]
      %v273 = vld [vmem:[#allocation2 + $0xe0] sm:$0xff]
      %v274 = vld [vmem:[#allocation2 + $0xe8] sm:$0xff]
      %v275 = vld [vmem:[#allocation2 + $0xf0] sm:$0xff]
      %v276 = vld [vmem:[#allocation2 + $0xf8] sm:$0xff]
      %v277 = vld [vmem:[%s196] sm:$0xf]
      %v278 = vld [vmem:[%s196 + $0x4] sm:$0xf]
      %v279 = vld [vmem:[%s196 + $0x8] sm:$0xf]
      %v280 = vld [vmem:[%s196 + $0xc] sm:$0xf]
      %v281 = vld [vmem:[%s196 + $0x10] sm:$0xf]
      %v282 = vld [vmem:[%s196 + $0x14] sm:$0xf]
      %v283 = vld [vmem:[%s196 + $0x18] sm:$0xf]
      %v284 = vld [vmem:[%s196 + $0x1c] sm:$0xf]
      %v285 = vld [vmem:[%s196 + $0x20] sm:$0xf]
      %v286 = vld [vmem:[%s196 + $0x24] sm:$0xf]
      %v287 = vld [vmem:[%s196 + $0x28] sm:$0xf]
      %v288 = vld [vmem:[%s196 + $0x2c] sm:$0xf]
      %v289 = vld [vmem:[%s196 + $0x30] sm:$0xf]
      %v290 = vld [vmem:[%s196 + $0x34] sm:$0xf]
      %v291 = vld [vmem:[%s196 + $0x38] sm:$0xf]
      %v292 = vld [vmem:[%s196 + $0x3c] sm:$0xf]
      %v293 = vld [vmem:[%s196 + $0x40] sm:$0xf]
      %v294 = vld [vmem:[%s196 + $0x44] sm:$0xf]
      %v295 = vld [vmem:[%s196 + $0x48] sm:$0xf]
      %v296 = vld [vmem:[%s196 + $0x4c] sm:$0xf]
      %v297 = vld [vmem:[%s196 + $0x50] sm:$0xf]
      %v298 = vld [vmem:[%s196 + $0x54] sm:$0xf]
      %v299 = vld [vmem:[%s196 + $0x58] sm:$0xf]
      %v300 = vld [vmem:[%s196 + $0x5c] sm:$0xf]
      %v301 = vld [vmem:[%s196 + $0x60] sm:$0xf]
      %v302 = vld [vmem:[%s196 + $0x64] sm:$0xf]
      %v303 = vld [vmem:[%s196 + $0x68] sm:$0xf]
      %v304 = vld [vmem:[%s196 + $0x6c] sm:$0xf]
      %v305 = vld [vmem:[%s196 + $0x70] sm:$0xf]
      %v306 = vld [vmem:[%s196 + $0x74] sm:$0xf]
      %v307 = vld [vmem:[%s196 + $0x78] sm:$0xf]
      %v308 = vld [vmem:[%s196 + $0x7c] sm:$0xf]
      %s309 = sshra.s32 %s244, 3
      %s310 = sand.u32 %s244, 7
      %s311 = smul.addr %s309, 4
      %s312 = scalar_lea.vmem %s1, %s311
      %v313 = vld [vmem:[%s312] sm:$0xf]
      %v314 = vld [vmem:[%s312 + $0x4] sm:$0xf]
      %v315 = vld [vmem:[%s312 + $0x8] sm:$0xf]
      %v316 = vld [vmem:[%s312 + $0xc] sm:$0xf]
      %v317 = vld [vmem:[%s312 + $0x10] sm:$0xf]
      %v318 = vld [vmem:[%s312 + $0x14] sm:$0xf]
      %v319 = vld [vmem:[%s312 + $0x18] sm:$0xf]
      %v320 = vld [vmem:[%s312 + $0x1c] sm:$0xf]
      %v321 = vld [vmem:[%s312 + $0x20] sm:$0xf]
      %v322 = vld [vmem:[%s312 + $0x24] sm:$0xf]
      %v323 = vld [vmem:[%s312 + $0x28] sm:$0xf]
      %v324 = vld [vmem:[%s312 + $0x2c] sm:$0xf]
      %v325 = vld [vmem:[%s312 + $0x30] sm:$0xf]
      %v326 = vld [vmem:[%s312 + $0x34] sm:$0xf]
      %v327 = vld [vmem:[%s312 + $0x38] sm:$0xf]
      %v328 = vld [vmem:[%s312 + $0x3c] sm:$0xf]
      %v361 = vunpack.c.l.b16 %v277
      %v362 = vunpack.c.l.b16 %v278
      %v363 = vunpack.c.l.b16 %v279
      %v364 = vunpack.c.l.b16 %v280
      %v365 = vunpack.c.l.b16 %v281
      %v366 = vunpack.c.l.b16 %v282
      %v367 = vunpack.c.l.b16 %v283
      %v368 = vunpack.c.l.b16 %v284
      %v369 = vunpack.c.l.b16 %v285
      %v370 = vunpack.c.l.b16 %v286
      %v371 = vunpack.c.l.b16 %v287
      %v372 = vunpack.c.l.b16 %v288
      %v373 = vunpack.c.l.b16 %v289
      %v374 = vunpack.c.l.b16 %v290
      %v375 = vunpack.c.l.b16 %v291
      %v376 = vunpack.c.l.b16 %v292
      %v377 = vunpack.c.l.b16 %v293
      %v378 = vunpack.c.l.b16 %v294
      %v379 = vunpack.c.l.b16 %v295
      %v380 = vunpack.c.l.b16 %v296
      %v381 = vunpack.c.l.b16 %v297
      %v382 = vunpack.c.l.b16 %v298
      %v383 = vunpack.c.l.b16 %v299
      %v384 = vunpack.c.l.b16 %v300
      %v385 = vunpack.c.l.b16 %v301
      %v386 = vunpack.c.l.b16 %v302
      %v387 = vunpack.c.l.b16 %v303
      %v388 = vunpack.c.l.b16 %v304
      %v389 = vunpack.c.l.b16 %v305
      %v390 = vunpack.c.l.b16 %v306
      %v391 = vunpack.c.l.b16 %v307
      %v392 = vunpack.c.l.b16 %v308
      %v393 = vpack.c.b16 %v362, %v361
      %v394 = vpack.c.b16 %v364, %v363
      %v395 = vpack.c.b16 %v366, %v365
      %v396 = vpack.c.b16 %v368, %v367
      %v397 = vpack.c.b16 %v370, %v369
      %v398 = vpack.c.b16 %v372, %v371
      %v399 = vpack.c.b16 %v374, %v373
      %v400 = vpack.c.b16 %v376, %v375
      %v401 = vpack.c.b16 %v378, %v377
      %v402 = vpack.c.b16 %v380, %v379
      %v403 = vpack.c.b16 %v382, %v381
      %v404 = vpack.c.b16 %v384, %v383
      %v405 = vpack.c.b16 %v386, %v385
      %v406 = vpack.c.b16 %v388, %v387
      %v407 = vpack.c.b16 %v390, %v389
      %v408 = vpack.c.b16 %v392, %v391
      %v441 = vunpack.c.l.b16 %v313
      %v442 = vunpack.c.l.b16 %v314
      %v443 = vunpack.c.l.b16 %v315
      %v444 = vunpack.c.l.b16 %v316
      %v445 = vunpack.c.l.b16 %v317
      %v446 = vunpack.c.l.b16 %v318
      %v447 = vunpack.c.l.b16 %v319
      %v448 = vunpack.c.l.b16 %v320
      %v449 = vunpack.c.l.b16 %v321
      %v450 = vunpack.c.l.b16 %v322
      %v451 = vunpack.c.l.b16 %v323
      %v452 = vunpack.c.l.b16 %v324
      %v453 = vunpack.c.l.b16 %v325
      %v454 = vunpack.c.l.b16 %v326
      %v455 = vunpack.c.l.b16 %v327
      %v456 = vunpack.c.l.b16 %v328
      %v457 = vpack.c.b16 %v442, %v441
      %v458 = vpack.c.b16 %v444, %v443
      %v459 = vpack.c.b16 %v446, %v445
      %v460 = vpack.c.b16 %v448, %v447
      %v461 = vpack.c.b16 %v450, %v449
      %v462 = vpack.c.b16 %v452, %v451
      %v463 = vpack.c.b16 %v454, %v453
      %v464 = vpack.c.b16 %v456, %v455
      %473 = vmatpush.bf16.msra.mxu0 %v464
      %474 = vmatpush.bf16.msra.mxu0 %v463
      %475 = vmatpush.bf16.msra.mxu0 %v462
      %476 = vmatpush.bf16.msra.mxu0 %v461
      %477 = vmatpush.bf16.msra.mxu0 %v460
      %478 = vmatpush.bf16.msra.mxu0 %v459
      %479 = vmatpush.bf16.msra.mxu0 %v458
      %480 = vmatpush.bf16.msra.mxu0 %v457
      %481 = vmatmul.bf16.gmra.mxu0 %v393
      %v482 = vpop.f32.mrf.mxu0
      %v483 = vadd.f32 0.0, %v482
      %v484 = vpop.f32.mrf.mxu0
      %v485 = vadd.f32 0.0, %v484
      %486 = vmatmul.bf16.gmra.mxu0 %v394
      %v487 = vpop.f32.mrf.mxu0
      %v488 = vadd.f32 0.0, %v487
      %v489 = vpop.f32.mrf.mxu0
      %v490 = vadd.f32 0.0, %v489
      %491 = vmatmul.bf16.gmra.mxu0 %v395
      %v492 = vpop.f32.mrf.mxu0
      %v493 = vadd.f32 0.0, %v492
      %v494 = vpop.f32.mrf.mxu0
      %v495 = vadd.f32 0.0, %v494
      %496 = vmatmul.bf16.gmra.mxu0 %v396
      %v497 = vpop.f32.mrf.mxu0
      %v498 = vadd.f32 0.0, %v497
      %v499 = vpop.f32.mrf.mxu0
      %v500 = vadd.f32 0.0, %v499
      %501 = vmatmul.bf16.gmra.mxu0 %v397
      %v502 = vpop.f32.mrf.mxu0
      %v503 = vadd.f32 0.0, %v502
      %v504 = vpop.f32.mrf.mxu0
      %v505 = vadd.f32 0.0, %v504
      %506 = vmatmul.bf16.gmra.mxu0 %v398
      %v507 = vpop.f32.mrf.mxu0
      %v508 = vadd.f32 0.0, %v507
      %v509 = vpop.f32.mrf.mxu0
      %v510 = vadd.f32 0.0, %v509
      %511 = vmatmul.bf16.gmra.mxu0 %v399
      %v512 = vpop.f32.mrf.mxu0
      %v513 = vadd.f32 0.0, %v512
      %v514 = vpop.f32.mrf.mxu0
      %v515 = vadd.f32 0.0, %v514
      %516 = vmatmul.bf16.gmra.mxu0 %v400
      %v517 = vpop.f32.mrf.mxu0
      %v518 = vadd.f32 0.0, %v517
      %v519 = vpop.f32.mrf.mxu0
      %v520 = vadd.f32 0.0, %v519
      %521 = vmatmul.bf16.gmra.mxu0 %v401
      %v522 = vpop.f32.mrf.mxu0
      %v523 = vadd.f32 0.0, %v522
      %v524 = vpop.f32.mrf.mxu0
      %v525 = vadd.f32 0.0, %v524
      %526 = vmatmul.bf16.gmra.mxu0 %v402
      %v527 = vpop.f32.mrf.mxu0
      %v528 = vadd.f32 0.0, %v527
      %v529 = vpop.f32.mrf.mxu0
      %v530 = vadd.f32 0.0, %v529
      %531 = vmatmul.bf16.gmra.mxu0 %v403
      %v532 = vpop.f32.mrf.mxu0
      %v533 = vadd.f32 0.0, %v532
      %v534 = vpop.f32.mrf.mxu0
      %v535 = vadd.f32 0.0, %v534
      %536 = vmatmul.bf16.gmra.mxu0 %v404
      %v537 = vpop.f32.mrf.mxu0
      %v538 = vadd.f32 0.0, %v537
      %v539 = vpop.f32.mrf.mxu0
      %v540 = vadd.f32 0.0, %v539
      %541 = vmatmul.bf16.gmra.mxu0 %v405
      %v542 = vpop.f32.mrf.mxu0
      %v543 = vadd.f32 0.0, %v542
      %v544 = vpop.f32.mrf.mxu0
      %v545 = vadd.f32 0.0, %v544
      %546 = vmatmul.bf16.gmra.mxu0 %v406
      %v547 = vpop.f32.mrf.mxu0
      %v548 = vadd.f32 0.0, %v547
      %v549 = vpop.f32.mrf.mxu0
      %v550 = vadd.f32 0.0, %v549
      %551 = vmatmul.bf16.gmra.mxu0 %v407
      %v552 = vpop.f32.mrf.mxu0
      %v553 = vadd.f32 0.0, %v552
      %v554 = vpop.f32.mrf.mxu0
      %v555 = vadd.f32 0.0, %v554
      %556 = vmatmul.bf16.gmra.mxu0 %v408
      %v557 = vpop.f32.mrf.mxu0
      %v558 = vadd.f32 0.0, %v557
      %v559 = vpop.f32.mrf.mxu0
      %v560 = vadd.f32 0.0, %v559
      %561 = vdwg.mxu0
      %v562 = vadd.f32 %v245, %v483
      %v563 = vadd.f32 %v246, %v485
      %v564 = vadd.f32 %v247, %v488
      %v565 = vadd.f32 %v248, %v490
      %v566 = vadd.f32 %v249, %v493
      %v567 = vadd.f32 %v250, %v495
      %v568 = vadd.f32 %v251, %v498
      %v569 = vadd.f32 %v252, %v500
      %v570 = vadd.f32 %v253, %v503
      %v571 = vadd.f32 %v254, %v505
      %v572 = vadd.f32 %v255, %v508
      %v573 = vadd.f32 %v256, %v510
      %v574 = vadd.f32 %v257, %v513
      %v575 = vadd.f32 %v258, %v515
      %v576 = vadd.f32 %v259, %v518
      %v577 = vadd.f32 %v260, %v520
      %v578 = vadd.f32 %v261, %v523
      %v579 = vadd.f32 %v262, %v525
      %v580 = vadd.f32 %v263, %v528
      %v581 = vadd.f32 %v264, %v530
      %v582 = vadd.f32 %v265, %v533
      %v583 = vadd.f32 %v266, %v535
      %v584 = vadd.f32 %v267, %v538
      %v585 = vadd.f32 %v268, %v540
      %v586 = vadd.f32 %v269, %v543
      %v587 = vadd.f32 %v270, %v545
      %v588 = vadd.f32 %v271, %v548
      %v589 = vadd.f32 %v272, %v550
      %v590 = vadd.f32 %v273, %v553
      %v591 = vadd.f32 %v274, %v555
      %v592 = vadd.f32 %v275, %v558
      %v593 = vadd.f32 %v276, %v560
      %594 = vst [vmem:[#allocation2] sm:$0xff] %v562
      %595 = vst [vmem:[#allocation2 + $0x8] sm:$0xff] %v563
      %596 = vst [vmem:[#allocation2 + $0x10] sm:$0xff] %v564
      %597 = vst [vmem:[#allocation2 + $0x18] sm:$0xff] %v565
      %598 = vst [vmem:[#allocation2 + $0x20] sm:$0xff] %v566
      %599 = vst [vmem:[#allocation2 + $0x28] sm:$0xff] %v567
      %600 = vst [vmem:[#allocation2 + $0x30] sm:$0xff] %v568
      %601 = vst [vmem:[#allocation2 + $0x38] sm:$0xff] %v569
      %602 = vst [vmem:[#allocation2 + $0x40] sm:$0xff] %v570
      %603 = vst [vmem:[#allocation2 + $0x48] sm:$0xff] %v571
      %604 = vst [vmem:[#allocation2 + $0x50] sm:$0xff] %v572
      %605 = vst [vmem:[#allocation2 + $0x58] sm:$0xff] %v573
      %606 = vst [vmem:[#allocation2 + $0x60] sm:$0xff] %v574
      %607 = vst [vmem:[#allocation2 + $0x68] sm:$0xff] %v575
      %608 = vst [vmem:[#allocation2 + $0x70] sm:$0xff] %v576
      %609 = vst [vmem:[#allocation2 + $0x78] sm:$0xff] %v577
      %610 = vst [vmem:[#allocation2 + $0x80] sm:$0xff] %v578
      %611 = vst [vmem:[#allocation2 + $0x88] sm:$0xff] %v579
      %612 = vst [vmem:[#allocation2 + $0x90] sm:$0xff] %v580
      %613 = vst [vmem:[#allocation2 + $0x98] sm:$0xff] %v581
      %614 = vst [vmem:[#allocation2 + $0xa0] sm:$0xff] %v582
      %615 = vst [vmem:[#allocation2 + $0xa8] sm:$0xff] %v583
      %616 = vst [vmem:[#allocation2 + $0xb0] sm:$0xff] %v584
      %617 = vst [vmem:[#allocation2 + $0xb8] sm:$0xff] %v585
      %618 = vst [vmem:[#allocation2 + $0xc0] sm:$0xff] %v586
      %619 = vst [vmem:[#allocation2 + $0xc8] sm:$0xff] %v587
      %620 = vst [vmem:[#allocation2 + $0xd0] sm:$0xff] %v588
      %621 = vst [vmem:[#allocation2 + $0xd8] sm:$0xff] %v589
      %622 = vst [vmem:[#allocation2 + $0xe0] sm:$0xff] %v590
      %623 = vst [vmem:[#allocation2 + $0xe8] sm:$0xff] %v591
      %624 = vst [vmem:[#allocation2 + $0xf0] sm:$0xff] %v592
      %625 = vst [vmem:[#allocation2 + $0xf8] sm:$0xff] %v593
      // Predicated region
      $region33: #{basic_conv2d.2} parent=27 // pred_check
        %p626 = pneg %p208
      $region34: #{basic_conv2d.2} parent=27 // pred_check_branch
        %628 = sbr.rel (%p626) target = $region36
      $region35: #{basic_conv2d.2} parent=27 // pred_region
        %v629 = vld [vmem:[#allocation2] sm:$0xff]
        %v630 = vld [vmem:[#allocation2 + $0x8] sm:$0xff]
        %v631 = vld [vmem:[#allocation2 + $0x10] sm:$0xff]
        %v632 = vld [vmem:[#allocation2 + $0x18] sm:$0xff]
        %v633 = vld [vmem:[#allocation2 + $0x20] sm:$0xff]
        %v634 = vld [vmem:[#allocation2 + $0x28] sm:$0xff]
        %v635 = vld [vmem:[#allocation2 + $0x30] sm:$0xff]
        %v636 = vld [vmem:[#allocation2 + $0x38] sm:$0xff]
        %v637 = vld [vmem:[#allocation2 + $0x40] sm:$0xff]
        %v638 = vld [vmem:[#allocation2 + $0x48] sm:$0xff]
        %v639 = vld [vmem:[#allocation2 + $0x50] sm:$0xff]
        %v640 = vld [vmem:[#allocation2 + $0x58] sm:$0xff]
        %v641 = vld [vmem:[#allocation2 + $0x60] sm:$0xff]
        %v642 = vld [vmem:[#allocation2 + $0x68] sm:$0xff]
        %v643 = vld [vmem:[#allocation2 + $0x70] sm:$0xff]
        %v644 = vld [vmem:[#allocation2 + $0x78] sm:$0xff]
        %v645 = vld [vmem:[#allocation2 + $0x80] sm:$0xff]
        %v646 = vld [vmem:[#allocation2 + $0x88] sm:$0xff]
        %v647 = vld [vmem:[#allocation2 + $0x90] sm:$0xff]
        %v648 = vld [vmem:[#allocation2 + $0x98] sm:$0xff]
        %v649 = vld [vmem:[#allocation2 + $0xa0] sm:$0xff]
        %v650 = vld [vmem:[#allocation2 + $0xa8] sm:$0xff]
        %v651 = vld [vmem:[#allocation2 + $0xb0] sm:$0xff]
        %v652 = vld [vmem:[#allocation2 + $0xb8] sm:$0xff]
        %v653 = vld [vmem:[#allocation2 + $0xc0] sm:$0xff]
        %v654 = vld [vmem:[#allocation2 + $0xc8] sm:$0xff]
        %v655 = vld [vmem:[#allocation2 + $0xd0] sm:$0xff]
        %v656 = vld [vmem:[#allocation2 + $0xd8] sm:$0xff]
        %v657 = vld [vmem:[#allocation2 + $0xe0] sm:$0xff]
        %v658 = vld [vmem:[#allocation2 + $0xe8] sm:$0xff]
        %v659 = vld [vmem:[#allocation2 + $0xf0] sm:$0xff]
        %v660 = vld [vmem:[#allocation2 + $0xf8] sm:$0xff]
        %v661 = vpack.c.bf16 %v629, %v629
        %v662 = vpack.c.bf16 %v630, %v630
        %v663 = vpack.c.bf16 %v631, %v631
        %v664 = vpack.c.bf16 %v632, %v632
        %v665 = vpack.c.bf16 %v633, %v633
        %v666 = vpack.c.bf16 %v634, %v634
        %v667 = vpack.c.bf16 %v635, %v635
        %v668 = vpack.c.bf16 %v636, %v636
        %v669 = vpack.c.bf16 %v637, %v637
        %v670 = vpack.c.bf16 %v638, %v638
        %v671 = vpack.c.bf16 %v639, %v639
        %v672 = vpack.c.bf16 %v640, %v640
        %v673 = vpack.c.bf16 %v641, %v641
        %v674 = vpack.c.bf16 %v642, %v642
        %v675 = vpack.c.bf16 %v643, %v643
        %v676 = vpack.c.bf16 %v644, %v644
        %v677 = vpack.c.bf16 %v645, %v645
        %v678 = vpack.c.bf16 %v646, %v646
        %v679 = vpack.c.bf16 %v647, %v647
        %v680 = vpack.c.bf16 %v648, %v648
        %v681 = vpack.c.bf16 %v649, %v649
        %v682 = vpack.c.bf16 %v650, %v650
        %v683 = vpack.c.bf16 %v651, %v651
        %v684 = vpack.c.bf16 %v652, %v652
        %v685 = vpack.c.bf16 %v653, %v653
        %v686 = vpack.c.bf16 %v654, %v654
        %v687 = vpack.c.bf16 %v655, %v655
        %v688 = vpack.c.bf16 %v656, %v656
        %v689 = vpack.c.bf16 %v657, %v657
        %v690 = vpack.c.bf16 %v658, %v658
        %v691 = vpack.c.bf16 %v659, %v659
        %v692 = vpack.c.bf16 %v660, %v660
        %693 = vst [vmem:[%s202] sm:$0xf] %v661
        %694 = vst [vmem:[%s202 + $0x4] sm:$0xf] %v662
        %695 = vst [vmem:[%s202 + $0x8] sm:$0xf] %v663
        %696 = vst [vmem:[%s202 + $0xc] sm:$0xf] %v664
        %697 = vst [vmem:[%s202 + $0x10] sm:$0xf] %v665
        %698 = vst [vmem:[%s202 + $0x14] sm:$0xf] %v666
        %699 = vst [vmem:[%s202 + $0x18] sm:$0xf] %v667
        %700 = vst [vmem:[%s202 + $0x1c] sm:$0xf] %v668
        %701 = vst [vmem:[%s202 + $0x20] sm:$0xf] %v669
        %702 = vst [vmem:[%s202 + $0x24] sm:$0xf] %v670
        %703 = vst [vmem:[%s202 + $0x28] sm:$0xf] %v671
        %704 = vst [vmem:[%s202 + $0x2c] sm:$0xf] %v672
        %705 = vst [vmem:[%s202 + $0x30] sm:$0xf] %v673
        %706 = vst [vmem:[%s202 + $0x34] sm:$0xf] %v674
        %707 = vst [vmem:[%s202 + $0x38] sm:$0xf] %v675
        %708 = vst [vmem:[%s202 + $0x3c] sm:$0xf] %v676
        %709 = vst [vmem:[%s202 + $0x40] sm:$0xf] %v677
        %710 = vst [vmem:[%s202 + $0x44] sm:$0xf] %v678
        %711 = vst [vmem:[%s202 + $0x48] sm:$0xf] %v679
        %712 = vst [vmem:[%s202 + $0x4c] sm:$0xf] %v680
        %713 = vst [vmem:[%s202 + $0x50] sm:$0xf] %v681
        %714 = vst [vmem:[%s202 + $0x54] sm:$0xf] %v682
        %715 = vst [vmem:[%s202 + $0x58] sm:$0xf] %v683
        %716 = vst [vmem:[%s202 + $0x5c] sm:$0xf] %v684
        %717 = vst [vmem:[%s202 + $0x60] sm:$0xf] %v685
        %718 = vst [vmem:[%s202 + $0x64] sm:$0xf] %v686
        %719 = vst [vmem:[%s202 + $0x68] sm:$0xf] %v687
        %720 = vst [vmem:[%s202 + $0x6c] sm:$0xf] %v688
        %721 = vst [vmem:[%s202 + $0x70] sm:$0xf] %v689
        %722 = vst [vmem:[%s202 + $0x74] sm:$0xf] %v690
        %723 = vst [vmem:[%s202 + $0x78] sm:$0xf] %v691
        %724 = vst [vmem:[%s202 + $0x7c] sm:$0xf] %v692
        %v725 = vadd.f32 %v629, %v630
        %v726 = vadd.f32 %v725, %v631
        %v727 = vadd.f32 %v726, %v632
        %v728 = vadd.f32 %v727, %v633
        %v729 = vadd.f32 %v728, %v634
        %v730 = vadd.f32 %v729, %v635
        %v731 = vadd.f32 %v730, %v636
        %v732 = vadd.f32 %v731, %v637
        %v733 = vadd.f32 %v732, %v638
        %v734 = vadd.f32 %v733, %v639
        %v735 = vadd.f32 %v734, %v640
        %v736 = vadd.f32 %v735, %v641
        %v737 = vadd.f32 %v736, %v642
        %v738 = vadd.f32 %v737, %v643
        %v739 = vadd.f32 %v738, %v644
        %v740 = vadd.f32 %v739, %v645
        %v741 = vadd.f32 %v740, %v646
        %v742 = vadd.f32 %v741, %v647
        %v743 = vadd.f32 %v742, %v648
        %v744 = vadd.f32 %v743, %v649
        %v745 = vadd.f32 %v744, %v650
        %v746 = vadd.f32 %v745, %v651
        %v747 = vadd.f32 %v746, %v652
        %v748 = vadd.f32 %v747, %v653
        %v749 = vadd.f32 %v748, %v654
        %v750 = vadd.f32 %v749, %v655
        %v751 = vadd.f32 %v750, %v656
        %v752 = vadd.f32 %v751, %v657
        %v753 = vadd.f32 %v752, %v658
        %v754 = vadd.f32 %v753, %v659
        %v755 = vadd.f32 %v754, %v660
        %v756 = vrot.slane %v755, 4
        %v757 = vadd.f32 %v755, %v756
        %v758 = vrot.slane %v757, 2
        %v759 = vadd.f32 %v757, %v758
        %v760 = vrot.slane %v759, 1
        %v761 = vadd.f32 %v759, %v760
        %762 = vst [vmem:[%s207] sm:$0x1] %v761
        %v763 = vmul.f32 %v629, %v629
        %v764 = vmul.f32 %v630, %v630
        %v765 = vmul.f32 %v631, %v631
        %v766 = vmul.f32 %v632, %v632
        %v767 = vmul.f32 %v633, %v633
        %v768 = vmul.f32 %v634, %v634
        %v769 = vmul.f32 %v635, %v635
        %v770 = vmul.f32 %v636, %v636
        %v771 = vmul.f32 %v637, %v637
        %v772 = vmul.f32 %v638, %v638
        %v773 = vmul.f32 %v639, %v639
        %v774 = vmul.f32 %v640, %v640
        %v775 = vmul.f32 %v641, %v641
        %v776 = vmul.f32 %v642, %v642
        %v777 = vmul.f32 %v643, %v643
        %v778 = vmul.f32 %v644, %v644
        %v779 = vmul.f32 %v645, %v645
        %v780 = vmul.f32 %v646, %v646
        %v781 = vmul.f32 %v647, %v647
        %v782 = vmul.f32 %v648, %v648
        %v783 = vmul.f32 %v649, %v649
        %v784 = vmul.f32 %v650, %v650
        %v785 = vmul.f32 %v651, %v651
        %v786 = vmul.f32 %v652, %v652
        %v787 = vmul.f32 %v653, %v653
        %v788 = vmul.f32 %v654, %v654
        %v789 = vmul.f32 %v655, %v655
        %v790 = vmul.f32 %v656, %v656
        %v791 = vmul.f32 %v657, %v657
        %v792 = vmul.f32 %v658, %v658
        %v793 = vmul.f32 %v659, %v659
        %v794 = vmul.f32 %v660, %v660
        %v795 = vadd.f32 %v763, %v764
        %v796 = vadd.f32 %v795, %v765
        %v797 = vadd.f32 %v796, %v766
        %v798 = vadd.f32 %v797, %v767
        %v799 = vadd.f32 %v798, %v768
        %v800 = vadd.f32 %v799, %v769
        %v801 = vadd.f32 %v800, %v770
        %v802 = vadd.f32 %v801, %v771
        %v803 = vadd.f32 %v802, %v772
        %v804 = vadd.f32 %v803, %v773
        %v805 = vadd.f32 %v804, %v774
        %v806 = vadd.f32 %v805, %v775
        %v807 = vadd.f32 %v806, %v776
        %v808 = vadd.f32 %v807, %v777
        %v809 = vadd.f32 %v808, %v778
        %v810 = vadd.f32 %v809, %v779
        %v811 = vadd.f32 %v810, %v780
        %v812 = vadd.f32 %v811, %v781
        %v813 = vadd.f32 %v812, %v782
        %v814 = vadd.f32 %v813, %v783
        %v815 = vadd.f32 %v814, %v784
        %v816 = vadd.f32 %v815, %v785
        %v817 = vadd.f32 %v816, %v786
        %v818 = vadd.f32 %v817, %v787
        %v819 = vadd.f32 %v818, %v788
        %v820 = vadd.f32 %v819, %v789
        %v821 = vadd.f32 %v820, %v790
        %v822 = vadd.f32 %v821, %v791
        %v823 = vadd.f32 %v822, %v792
        %v824 = vadd.f32 %v823, %v793
        %v825 = vadd.f32 %v824, %v794
        %v826 = vrot.slane %v825, 4
        %v827 = vadd.f32 %v825, %v826
        %v828 = vrot.slane %v827, 2
        %v829 = vadd.f32 %v827, %v828
        %v830 = vrot.slane %v829, 1
        %v831 = vadd.f32 %v829, %v830
        %832 = vst [vmem:[%s207 + $0x1] sm:$0x1] %v831
      $region36: #{basic_conv2d.2} parent=27 // pred_fallthru
        _
      %s833 = smul.u32 32, %s19
      %p834 = scmp.lt.s32.totalorder %s833, 63
      %s835 = scalar_select %p834, %s833, 63
      %s836 = smul.addr %s835, 4
      %s837 = scalar_lea.vmem %s2, %s836
      %p838 = scmp.lt.s32.totalorder %s19, 1
      %s839 = scalar_select %p838, %s19, 1
      %s840 = smul.addr %s839, 2
      %s841 = scalar_lea.vmem %s3, %s840
      // Predicated region
      $region37: #{basic_conv2d.2} parent=27 // pred_check
        %p842 = pneg %p94
      $region38: #{basic_conv2d.2} parent=27 // pred_check_branch
        %844 = sbr.rel (%p842) target = $region40
      $region39: #{basic_conv2d.2} parent=27 // pred_region
        %s845 = smul.u32 32, %s19
      $region40: #{basic_conv2d.2} parent=27 // pred_fallthru
        _
      // Predicated region
      $region41: #{basic_conv2d.2} parent=27 // pred_check
        %p846 = pneg %p120
      $region42: #{basic_conv2d.2} parent=27 // pred_check_branch
        %848 = sbr.rel (%p846) target = $region44
      $region43: #{basic_conv2d.2} parent=27 // pred_region
        _
      $region44: #{basic_conv2d.2} parent=27 // pred_fallthru
        _
    $region28: #{basic_conv2d.2} parent=5 // pred_fallthru
      _
    %p849 = scmp.le.s32.totalorder 2, %s10
    // Predicated region
    $region45: #{basic_conv2d.2} parent=5 // pred_check
      %p850 = pneg %p849
    $region46: #{basic_conv2d.2} parent=5 // pred_check_branch
      %852 = sbr.rel (%p850) target = $region48
    $region47: #{basic_conv2d.2} parent=5 // pred_region
      %s853 = ssub.s32 %s10, 2
      // Predicated region
      $region49: #{basic_conv2d.2} parent=47 // pred_check
        %p854 = pneg %p100
      $region50: #{basic_conv2d.2} parent=47 // pred_check_branch
        %856 = sbr.rel (%p854) target = $region52
      $region51: #{basic_conv2d.2} parent=47 // pred_region
        %s857 = smul.u32 32, %s21
        %p858 = scmp.lt.s32.totalorder %s857, 63
        %s859 = scalar_select %p858, %s857, 63
        %s860 = smul.addr %s859, 4
        %s861 = scalar_lea.vmem %s2, %s860
      $region52: #{basic_conv2d.2} parent=47 // pred_fallthru
        _
      // Predicated region
      $region53: #{basic_conv2d.2} parent=47 // pred_check
        %p862 = pneg %p126
      $region54: #{basic_conv2d.2} parent=47 // pred_check_branch
        %864 = sbr.rel (%p862) target = $region56
      $region55: #{basic_conv2d.2} parent=47 // pred_region
        %p865 = scmp.lt.s32.totalorder %s21, 1
        %s866 = scalar_select %p865, %s21, 1
        %s867 = smul.addr %s866, 2
        %s868 = scalar_lea.vmem %s3, %s867
      $region56: #{basic_conv2d.2} parent=47 // pred_fallthru
        _
    $region48: #{basic_conv2d.2} parent=5 // pred_fallthru
      _
  $region6: #{basic_conv2d.2} parent=0 // loop_footer
    %s14 = sadd.s32 1, %s10
  $region7: #{basic_conv2d.2} parent=0 // loop_footer_branch
    %9 = sbr.rel target = $region3
  $region8: #{basic_conv2d.2} parent=0 // loop_exit
    _

</llo_original>
